<compile_context>
chip_gen: v5e
topology: v5e:2x2
jax: 0.10.0
libtpu: 0.0.40
codegen_flags: <defaults>
</compile_context>

<pallas_src>
import functools

import jax
import jax.numpy as jnp
from jax.experimental import pallas as pl
from jax.experimental.pallas import tpu as pltpu

_VMEM_LIMIT = 32 * 1024 * 1024  # explicit scoped-VMEM limit, safe on v5e/v6e/v7x


# -------------------- kernels 1 & 2: tiled matmul+bias+relu --------------------

def _mm_bias_relu_kernel(x_ref, w_ref, b_ref, o_ref):
    acc = jnp.dot(x_ref[...], w_ref[...], preferred_element_type=jnp.float32)
    o_ref[...] = jnp.maximum(acc + b_ref[...], 0.0).astype(o_ref.dtype)


def matmul_bias_relu(x, w, b_row, tile_m=512):
    """relu(x @ w + b).  x:(M,K), w:(K,N), b_row:(1,N).  Parallel M-grid."""
    M, K = x.shape
    N = w.shape[1]
    tm = min(tile_m, M)
    return pl.pallas_call(
        _mm_bias_relu_kernel,
        out_shape=jax.ShapeDtypeStruct((M, N), jnp.float32),
        grid=(pl.cdiv(M, tm),),
        in_specs=[pl.BlockSpec((tm, K), lambda i: (i, 0)),
                  pl.BlockSpec((K, N), lambda i: (0, 0)),
                  pl.BlockSpec((1, N), lambda i: (0, 0))],
        out_specs=pl.BlockSpec((tm, N), lambda i: (i, 0)),
        compiler_params=pltpu.CompilerParams(
            dimension_semantics=("parallel",),
            vmem_limit_bytes=_VMEM_LIMIT),
    )(x, w, b_row)


# ------------- kernel 3: fused fc + gate projection + LSTM + MLP head -------------

def _head_kernel(xflat_ref, aux_ref, wfc_ref, bfc_ref,
                 wih_fc_ref, wih_aux_ref, bg_ref, whh_ref, h0_ref, c0_ref,
                 m0w_ref, m0b_ref, m1w_ref, m1b_ref, m2row_ref, m2b_ref,
                 q_ref, hn_ref, cn_ref, lstm_scr, *, T, B, H):
    f32 = jnp.float32

    # Conv2dHeadModel fc (+ReLU); fc_out stays resident in VMEM/vregs.
    fc_out = jnp.maximum(
        jnp.dot(xflat_ref[...], wfc_ref[...], preferred_element_type=f32)
        + bfc_ref[...], 0.0)                                        # (T*B, fc)

    # LSTM input projection for all timesteps at once.  torch.cat([fc_out, prev_a,
    # prev_r, a]) is replaced by two partial products against the column-split W_ih.
    gx = (jnp.dot(fc_out, wih_fc_ref[...], preferred_element_type=f32)
          + jnp.dot(aux_ref[...], wih_aux_ref[...], preferred_element_type=f32)
          + bg_ref[...])                                            # (T*B, 4H)

    whh = whh_ref[...]
    h = h0_ref[...]
    c = c0_ref[...]
    # Recurrence: T is small & static -> fully unrolled in-VMEM loop (no per-step
    # grid pipelining / HBM traffic).  Gate slices start at lane offsets H/2H/3H;
    # with H=64 this is XLU relayout work only (accepted per review).
    for t in range(T):
        g = gx[t * B:(t + 1) * B, :] + jnp.dot(h, whh, preferred_element_type=f32)
        i = jax.nn.sigmoid(g[:, 0 * H:1 * H])
        f = jax.nn.sigmoid(g[:, 1 * H:2 * H])
        gg = jnp.tanh(g[:, 2 * H:3 * H])
        o = jax.nn.sigmoid(g[:, 3 * H:4 * H])
        c = f * c + i * gg
        h = o * jnp.tanh(c)
        lstm_scr[t * B:(t + 1) * B, :] = h
    hn_ref[...] = h
    cn_ref[...] = c

    # Fused MLP head: two ReLU layers on the MXU; the final (H->1) layer is a VPU
    # multiply + lane reduction instead of a 1-lane-wide MXU matmul.
    y = lstm_scr[...]
    y = jnp.maximum(jnp.dot(y, m0w_ref[...], preferred_element_type=f32)
                    + m0b_ref[...], 0.0)
    y = jnp.maximum(jnp.dot(y, m1w_ref[...], preferred_element_type=f32)
                    + m1b_ref[...], 0.0)
    q_ref[...] = jnp.sum(y * m2row_ref[...], axis=-1, keepdims=True) + m2b_ref[...]


def fused_head_call(x_flat, aux, prep, h0, c0, T, B, H):
    vmem = pl.BlockSpec(memory_space=pltpu.MemorySpace.VMEM)
    out_shape = (jax.ShapeDtypeStruct((T * B, 1), jnp.float32),   # q (column)
                 jax.ShapeDtypeStruct((B, H), jnp.float32),       # hn
                 jax.ShapeDtypeStruct((B, H), jnp.float32))       # cn
    return pl.pallas_call(
        functools.partial(_head_kernel, T=T, B=B, H=H),
        out_shape=out_shape,
        in_specs=[vmem] * 16,
        out_specs=(vmem, vmem, vmem),
        scratch_shapes=[pltpu.VMEM((T * B, H), jnp.float32)],
        compiler_params=pltpu.CompilerParams(vmem_limit_bytes=_VMEM_LIMIT),
    )(x_flat, aux, prep["wfc"], prep["bfc"],
      prep["wih_fc"], prep["wih_aux"], prep["bg"],
      prep["whh_t"], h0, c0,
      prep["m0_w"], prep["m0_b"], prep["m1_w"], prep["m1_b"],
      prep["m2_row"], prep["m2_b"])


# ------------------------------ im2col glue (XLA) ------------------------------

def im2col_nchw(x, kh, kw, stride, pad):
    """x:(N,C,H,W) -> patches (N*oh*ow, C*kh*kw), feature order (c, i, j)."""
    if pad:
        x = jnp.pad(x, ((0, 0), (0, 0), (pad, pad), (pad, pad)))
    N, C, H, W = x.shape
    oh = (H - kh) // stride + 1
    ow = (W - kw) // stride + 1
    cols = [x[:, :, i:i + stride * oh:stride, j:j + stride * ow:stride]
            for i in range(kh) for j in range(kw)]
    p = jnp.stack(cols, axis=2)                       # (N, C, kh*kw, oh, ow)
    p = p.transpose(0, 3, 4, 1, 2).reshape(N * oh * ow, C * kh * kw)
    return p, oh, ow


def im2col_nhwc(x, kh, kw, stride, pad):
    """x:(N,H,W,C) -> patches (N*oh*ow, kh*kw*C), feature order (i, j, c)."""
    if pad:
        x = jnp.pad(x, ((0, 0), (pad, pad), (pad, pad), (0, 0)))
    N, H, W, C = x.shape
    oh = (H - kh) // stride + 1
    ow = (W - kw) // stride + 1
    cols = [x[:, i:i + stride * oh:stride, j:j + stride * ow:stride, :]
            for i in range(kh) for j in range(kw)]
    p = jnp.stack(cols, axis=3)                       # (N, oh, ow, kh*kw, C)
    p = p.reshape(N * oh * ow, kh * kw * C)
    return p, oh, ow


# -------------------------- parameters / preparation --------------------------

def _uniform(key, shape, fan_in):
    bound = 1.0 / (fan_in ** 0.5)
    return jax.random.uniform(key, shape, jnp.float32, -bound, bound)


def init_params(key, obs_shape, action_size,
                channels=(8, 16), kernel_sizes=(8, 4), strides=(4, 2),
                paddings=(0, 1), fc_sizes=128, lstm_size=64,
                hidden_sizes=(64, 64)):
    C, H, W = obs_shape
    keys = iter(jax.random.split(key, 32))
    params = {}
    in_c, h, w = C, H, W
    spatial = []
    for li, (oc, k, s, p) in enumerate(zip(channels, kernel_sizes, strides, paddings)):
        fan_in = in_c * k * k
        params[f"conv{li}_w"] = _uniform(next(keys), (oc, in_c, k, k), fan_in)
        params[f"conv{li}_b"] = _uniform(next(keys), (oc,), fan_in)
        h = (h + 2 * p - k) // s + 1
        w = (w + 2 * p - k) // s + 1
        spatial.append((h, w))
        in_c = oc
    conv_flat = in_c * h * w
    # Conv2dHeadModel fc (hidden_sizes=fc_sizes, output_size=None -> ReLU output)
    params["fc_w"] = _uniform(next(keys), (conv_flat, fc_sizes), conv_flat)
    params["fc_b"] = _uniform(next(keys), (fc_sizes,), conv_flat)
    # LSTM (gate order i, f, g, o — PyTorch convention)
    lstm_in = fc_sizes + action_size + 1 + action_size
    params["w_ih"] = _uniform(next(keys), (4 * lstm_size, lstm_in), lstm_size)
    params["w_hh"] = _uniform(next(keys), (4 * lstm_size, lstm_size), lstm_size)
    params["b_ih"] = _uniform(next(keys), (4 * lstm_size,), lstm_size)
    params["b_hh"] = _uniform(next(keys), (4 * lstm_size,), lstm_size)
    # MLP head: hidden_sizes=[64,64], output_size=1
    sizes = [lstm_size] + list(hidden_sizes) + [1]
    for li, (a, b) in enumerate(zip(sizes[:-1], sizes[1:])):
        params[f"mlp{li}_w"] = _uniform(next(keys), (a, b), a)
        params[f"mlp{li}_b"] = _uniform(next(keys), (b,), a)
    meta = dict(channels=tuple(channels), kernels=tuple(kernel_sizes),
                strides=tuple(strides), paddings=tuple(paddings),
                spatial=tuple(spatial), lstm_size=lstm_size, fc_sizes=fc_sizes,
                n_mlp=len(sizes) - 1)
    return params, meta


def prepare_params(params, meta):
    """One-time hoist of every weight reshape/transpose/bias fold into kernel-ready layout."""
    c0, c1 = meta["channels"]
    oh1, ow1 = meta["spatial"][1]
    F = meta["fc_sizes"]
    f32 = jnp.float32
    prep = {}
    # conv0: NCHW im2col, feature order (c_in, i, j) == torch weight.view order.
    prep["w0m"] = params["conv0_w"].reshape(c0, -1).T.astype(f32)
    prep["b0"] = params["conv0_b"].reshape(1, c0).astype(f32)
    # conv1: NHWC im2col, feature order (i, j, c_in).
    prep["w1m"] = params["conv1_w"].transpose(2, 3, 1, 0).reshape(-1, c1).astype(f32)
    prep["b1"] = params["conv1_b"].reshape(1, c1).astype(f32)
    # fc: permute rows from the PyTorch NCHW flatten order (c,y,x) to (y,x,c).
    prep["wfc"] = (params["fc_w"].reshape(c1, oh1, ow1, F)
                   .transpose(1, 2, 0, 3).reshape(c1 * oh1 * ow1, F).astype(f32))
    prep["bfc"] = params["fc_b"].reshape(1, F).astype(f32)
    # LSTM: transpose once, split W_ih into [fc | aux] column blocks, fold biases.
    wih_t = params["w_ih"].T.astype(f32)              # (lstm_in, 4H)
    prep["wih_fc"] = wih_t[:F]
    prep["wih_aux"] = wih_t[F:]
    prep["bg"] = (params["b_ih"] + params["b_hh"]).reshape(1, -1).astype(f32)
    prep["whh_t"] = params["w_hh"].T.astype(f32)      # (H, 4H)
    # MLP head; final (H,1) layer stored as a (1,H) row for a VPU mul + lane-reduce.
    prep["m0_w"] = params["mlp0_w"].astype(f32)
    prep["m0_b"] = params["mlp0_b"].reshape(1, -1).astype(f32)
    prep["m1_w"] = params["mlp1_w"].astype(f32)
    prep["m1_b"] = params["mlp1_b"].reshape(1, -1).astype(f32)
    prep["m2_row"] = params["mlp2_w"].T.astype(f32)
    prep["m2_b"] = params["mlp2_b"].reshape(1, 1).astype(f32)
    return prep


# ---------------------------------- forward ----------------------------------

def qconvlstm_forward(prep, meta, image, prev_action, prev_reward, action,
                      init_rnn_state=None):
    """image:(T,B,C,H,W); prev_action/action:(T,B,A); prev_reward:(T,B).
    Returns q:(T,B), next_rnn_state = (h, c) each (1,B,lstm_size)."""
    T, B = image.shape[:2]
    H = meta["lstm_size"]
    c0ch, c1ch = meta["channels"]
    k0, k1 = meta["kernels"]
    s0, s1 = meta["strides"]
    p0, p1 = meta["paddings"]

    x = image.reshape(T * B, *image.shape[2:]).astype(jnp.float32)

    # conv0 (Pallas call #1): NCHW im2col -> tiled matmul; output kept NHWC.
    pat0, oh0, ow0 = im2col_nchw(x, k0, k0, s0, p0)
    y0 = matmul_bias_relu(pat0, prep["w0m"], prep["b0"])
    y0 = y0.reshape(T * B, oh0, ow0, c0ch)                    # free reshape, NHWC

    # conv1 (Pallas call #2): NHWC im2col (weights pre-permuted) -> tiled matmul.
    pat1, oh1, ow1 = im2col_nhwc(y0, k1, k1, s1, p1)
    y1 = matmul_bias_relu(pat1, prep["w1m"], prep["b1"])
    x_flat = y1.reshape(T * B, oh1 * ow1 * c1ch)              # (y,x,c) flatten

    # small aux features; fc_out itself never round-trips through HBM.
    aux = jnp.concatenate([
        prev_action.reshape(T * B, -1).astype(jnp.float32),
        prev_reward.reshape(T * B, 1).astype(jnp.float32),
        action.reshape(T * B, -1).astype(jnp.float32)], axis=1)

    if init_rnn_state is None:
        h0 = jnp.zeros((B, H), jnp.float32)
        c0 = jnp.zeros((B, H), jnp.float32)
    else:
        h0 = init_rnn_state[0].reshape(B, H).astype(jnp.float32)
        c0 = init_rnn_state[1].reshape(B, H).astype(jnp.float32)

    # fused head (Pallas call #3): fc + gate projection + LSTM + MLP.
    q_col, hn, cn = fused_head_call(x_flat, aux, prep, h0, c0, T, B, H)
    q = q_col.reshape(T, B)
    return q, (hn.reshape(1, B, H), cn.reshape(1, B, H))


# ----------------------- plain-JAX reference (for checking) -----------------------

def reference_forward(params, meta, image, prev_action, prev_reward, action,
                      init_rnn_state):
    T, B = image.shape[:2]
    H = meta["lstm_size"]
    x = image.reshape(T * B, *image.shape[2:]).astype(jnp.float32)
    for li in range(2):
        k = meta["kernels"][li]; s = meta["strides"][li]; p = meta["paddings"][li]
        cout = meta["channels"][li]
        patches, oh, ow = im2col_nchw(x, k, k, s, p)
        w2 = params[f"conv{li}_w"].reshape(cout, -1).T
        y = jnp.maximum(patches @ w2 + params[f"conv{li}_b"], 0.0)
        x = y.reshape(T * B, oh, ow, cout).transpose(0, 3, 1, 2)   # back to NCHW
    x = x.reshape(T * B, -1)
    fc_out = jnp.maximum(x @ params["fc_w"] + params["fc_b"], 0.0)
    lstm_in = jnp.concatenate([fc_out.reshape(T, B, -1),
                               prev_action.reshape(T, B, -1),
                               prev_reward.reshape(T, B, 1),
                               action.reshape(T, B, -1)], axis=2)
    w_ih, w_hh = params["w_ih"], params["w_hh"]
    b = params["b_ih"] + params["b_hh"]
    h = init_rnn_state[0].reshape(B, H)
    c = init_rnn_state[1].reshape(B, H)
    outs = []
    for t in range(T):
        g = lstm_in[t] @ w_ih.T + b + h @ w_hh.T
        i = jax.nn.sigmoid(g[:, :H]); f = jax.nn.sigmoid(g[:, H:2 * H])
        gg = jnp.tanh(g[:, 2 * H:3 * H]); o = jax.nn.sigmoid(g[:, 3 * H:])
        c = f * c + i * gg
        h = o * jnp.tanh(c)
        outs.append(h)
    y = jnp.stack(outs).reshape(T * B, H)
    y = jnp.maximum(y @ params["mlp0_w"] + params["mlp0_b"], 0.0)
    y = jnp.maximum(y @ params["mlp1_w"] + params["mlp1_b"], 0.0)
    q = (y @ params["mlp2_w"] + params["mlp2_b"]).reshape(T, B)
    return q, (h.reshape(1, B, H), c.reshape(1, B, H))


# ------------------------------------ main ------------------------------------

if __name__ == "__main__":
    T, B = 4, 2
    obs_shape = (4, 20, 20)     # (C, H, W): conv0 -> 4x4x8, conv1 -> 2x2x16
    action_size = 3

    key = jax.random.PRNGKey(0)
    kp, ki, ka, kr, kact, khs, kcs = jax.random.split(key, 7)

    params, meta = init_params(kp, obs_shape, action_size)
    prep = prepare_params(params, meta)

    image = jax.random.normal(ki, (T, B) + obs_shape, jnp.float32)
    prev_action = jax.random.normal(ka, (T, B, action_size), jnp.float32)
    prev_reward = jax.random.normal(kr, (T, B), jnp.float32)
    action = jax.random.normal(kact, (T, B, action_size), jnp.float32)
    init_rnn_state = (
        0.1 * jax.random.normal(khs, (1, B, meta["lstm_size"]), jnp.float32),
        0.1 * jax.random.normal(kcs, (1, B, meta["lstm_size"]), jnp.float32),
    )

    fwd = jax.jit(functools.partial(qconvlstm_forward, prep, meta))
    q, (hn, cn) = fwd(image, prev_action, prev_reward, action, init_rnn_state)
    jax.block_until_ready((q, hn, cn))

    assert q.shape == (T, B)
    assert hn.shape == (1, B, meta["lstm_size"])
    assert cn.shape == (1, B, meta["lstm_size"])
    assert bool(jnp.all(jnp.isfinite(q)))

    # numerical parity against a plain-JAX implementation of the original module
    q_ref, (hn_ref, cn_ref) = reference_forward(params, meta, image, prev_action,
                                                prev_reward, action, init_rnn_state)
    assert bool(jnp.allclose(q, q_ref, atol=2e-2, rtol=2e-2))
    assert bool(jnp.allclose(hn, hn_ref, atol=2e-2, rtol=2e-2))
    assert bool(jnp.allclose(cn, cn_ref, atol=2e-2, rtol=2e-2))

    print("KERNEL_OK")
</pallas_src>

<mosaic_0001>
module attributes {stable_mosaic.version = 11 : i64} {
  func.func @_mm_bias_relu_kernel(%arg0: i32, %arg1: memref<128x256xf32, #tpu.memory_space<vmem>>, %arg2: memref<256x8xf32, #tpu.memory_space<vmem>>, %arg3: memref<1x8xf32, #tpu.memory_space<vmem>>, %arg4: memref<128x8xf32, #tpu.memory_space<vmem>>) attributes {dimension_semantics = [#tpu.dimension_semantics<parallel>], iteration_bounds = array<i64: 1>, scalar_prefetch = 0 : i64, scratch_operands = 0 : i64, tpu.core_type = #tpu.core_type<tc>, window_params = [{transform_indices = @transform_0, window_bounds = array<i64: 128, 256>}, {pipeline_mode = #tpu.pipeline_mode<synchronous>, transform_indices = @transform_1, window_bounds = array<i64: 256, 8>}, {pipeline_mode = #tpu.pipeline_mode<synchronous>, transform_indices = @transform_2, window_bounds = array<i64: 1, 8>}, {transform_indices = @transform_3, window_bounds = array<i64: 128, 8>}]} {
    %c0 = arith.constant 0 : index
    %c0_0 = arith.constant 0 : index
    %0 = vector.load %arg1[%c0, %c0_0] : memref<128x256xf32, #tpu.memory_space<vmem>>, vector<128x256xf32>
    %c0_1 = arith.constant 0 : index
    %c0_2 = arith.constant 0 : index
    %1 = vector.load %arg2[%c0_1, %c0_2] : memref<256x8xf32, #tpu.memory_space<vmem>>, vector<256x8xf32>
    %cst = arith.constant dense<0.000000e+00> : vector<128x8xf32>
    %2 = tpu.matmul %0, %1, %cst {dimension_numbers = #tpu.dot_dimension_numbers<[1], [0], [0], [1], [0, 0, 1, 1], [], []>} : vector<128x256xf32>, vector<256x8xf32>, vector<128x8xf32> -> vector<128x8xf32>
    %c0_3 = arith.constant 0 : index
    %c0_4 = arith.constant 0 : index
    %3 = vector.load %arg3[%c0_3, %c0_4] : memref<1x8xf32, #tpu.memory_space<vmem>>, vector<1x8xf32>
    %4 = vector.broadcast %3 : vector<1x8xf32> to vector<128x8xf32>
    %5 = arith.addf %2, %4 : vector<128x8xf32>
    %cst_5 = arith.constant 0.000000e+00 : f32
    %6 = vector.broadcast %cst_5 : f32 to vector<128x8xf32>
    %7 = arith.maximumf %5, %6 : vector<128x8xf32>
    %c0_6 = arith.constant 0 : index
    %c0_7 = arith.constant 0 : index
    %8 = vector.load %arg4[%c0_6, %c0_7] : memref<128x8xf32, #tpu.memory_space<vmem>>, vector<128x8xf32>
    tpu.vector_store %arg4[%c0_6, %c0_7], %7 {strides = array<i32>} : memref<128x8xf32, #tpu.memory_space<vmem>>, vector<128x8xf32>,
    return
  }
  func.func @transform_0(%arg0: i32) -> (i32, i32) {
    %c0_i32 = arith.constant 0 : i32
    %c0_i32_0 = arith.constant 0 : i32
    return %arg0, %c0_i32 : i32, i32
  }
  func.func @transform_1(%arg0: i32) -> (i32, i32) {
    %c0_i32 = arith.constant 0 : i32
    %c0_i32_0 = arith.constant 0 : i32
    %c0_i32_1 = arith.constant 0 : i32
    return %c0_i32, %c0_i32_0 : i32, i32
  }
  func.func @transform_2(%arg0: i32) -> (i32, i32) {
    %c0_i32 = arith.constant 0 : i32
    %c0_i32_0 = arith.constant 0 : i32
    %c0_i32_1 = arith.constant 0 : i32
    return %c0_i32, %c0_i32_0 : i32, i32
  }
  func.func @transform_3(%arg0: i32) -> (i32, i32) {
    %c0_i32 = arith.constant 0 : i32
    %c0_i32_0 = arith.constant 0 : i32
    return %arg0, %c0_i32 : i32, i32
  }
}

module attributes {stable_mosaic.version = 11 : i64} {
  func.func @_mm_bias_relu_kernel(%arg0: i32, %arg1: memref<32x128xf32, #tpu.memory_space<vmem>>, %arg2: memref<128x16xf32, #tpu.memory_space<vmem>>, %arg3: memref<1x16xf32, #tpu.memory_space<vmem>>, %arg4: memref<32x16xf32, #tpu.memory_space<vmem>>) attributes {dimension_semantics = [#tpu.dimension_semantics<parallel>], iteration_bounds = array<i64: 1>, scalar_prefetch = 0 : i64, scratch_operands = 0 : i64, tpu.core_type = #tpu.core_type<tc>, window_params = [{transform_indices = @transform_0, window_bounds = array<i64: 32, 128>}, {pipeline_mode = #tpu.pipeline_mode<synchronous>, transform_indices = @transform_1, window_bounds = array<i64: 128, 16>}, {pipeline_mode = #tpu.pipeline_mode<synchronous>, transform_indices = @transform_2, window_bounds = array<i64: 1, 16>}, {transform_indices = @transform_3, window_bounds = array<i64: 32, 16>}]} {
    %c0 = arith.constant 0 : index
    %c0_0 = arith.constant 0 : index
    %0 = vector.load %arg1[%c0, %c0_0] : memref<32x128xf32, #tpu.memory_space<vmem>>, vector<32x128xf32>
    %c0_1 = arith.constant 0 : index
    %c0_2 = arith.constant 0 : index
    %1 = vector.load %arg2[%c0_1, %c0_2] : memref<128x16xf32, #tpu.memory_space<vmem>>, vector<128x16xf32>
    %cst = arith.constant dense<0.000000e+00> : vector<32x16xf32>
    %2 = tpu.matmul %0, %1, %cst {dimension_numbers = #tpu.dot_dimension_numbers<[1], [0], [0], [1], [0, 0, 1, 1], [], []>} : vector<32x128xf32>, vector<128x16xf32>, vector<32x16xf32> -> vector<32x16xf32>
    %c0_3 = arith.constant 0 : index
    %c0_4 = arith.constant 0 : index
    %3 = vector.load %arg3[%c0_3, %c0_4] : memref<1x16xf32, #tpu.memory_space<vmem>>, vector<1x16xf32>
    %4 = vector.broadcast %3 : vector<1x16xf32> to vector<32x16xf32>
    %5 = arith.addf %2, %4 : vector<32x16xf32>
    %cst_5 = arith.constant 0.000000e+00 : f32
    %6 = vector.broadcast %cst_5 : f32 to vector<32x16xf32>
    %7 = arith.maximumf %5, %6 : vector<32x16xf32>
    %c0_6 = arith.constant 0 : index
    %c0_7 = arith.constant 0 : index
    %8 = vector.load %arg4[%c0_6, %c0_7] : memref<32x16xf32, #tpu.memory_space<vmem>>, vector<32x16xf32>
    tpu.vector_store %arg4[%c0_6, %c0_7], %7 {strides = array<i32>} : memref<32x16xf32, #tpu.memory_space<vmem>>, vector<32x16xf32>,
    return
  }
  func.func @transform_0(%arg0: i32) -> (i32, i32) {
    %c0_i32 = arith.constant 0 : i32
    %c0_i32_0 = arith.constant 0 : i32
    return %arg0, %c0_i32 : i32, i32
  }
  func.func @transform_1(%arg0: i32) -> (i32, i32) {
    %c0_i32 = arith.constant 0 : i32
    %c0_i32_0 = arith.constant 0 : i32
    %c0_i32_1 = arith.constant 0 : i32
    return %c0_i32, %c0_i32_0 : i32, i32
  }
  func.func @transform_2(%arg0: i32) -> (i32, i32) {
    %c0_i32 = arith.constant 0 : i32
    %c0_i32_0 = arith.constant 0 : i32
    %c0_i32_1 = arith.constant 0 : i32
    return %c0_i32, %c0_i32_0 : i32, i32
  }
  func.func @transform_3(%arg0: i32) -> (i32, i32) {
    %c0_i32 = arith.constant 0 : i32
    %c0_i32_0 = arith.constant 0 : i32
    return %arg0, %c0_i32 : i32, i32
  }
}

module attributes {stable_mosaic.version = 11 : i64} {
  func.func @_head_kernel(%arg0: memref<8x64xf32, #tpu.memory_space<vmem>>, %arg1: memref<8x7xf32, #tpu.memory_space<vmem>>, %arg2: memref<64x128xf32, #tpu.memory_space<vmem>>, %arg3: memref<1x128xf32, #tpu.memory_space<vmem>>, %arg4: memref<128x256xf32, #tpu.memory_space<vmem>>, %arg5: memref<7x256xf32, #tpu.memory_space<vmem>>, %arg6: memref<1x256xf32, #tpu.memory_space<vmem>>, %arg7: memref<64x256xf32, #tpu.memory_space<vmem>>, %arg8: memref<2x64xf32, #tpu.memory_space<vmem>>, %arg9: memref<2x64xf32, #tpu.memory_space<vmem>>, %arg10: memref<64x64xf32, #tpu.memory_space<vmem>>, %arg11: memref<1x64xf32, #tpu.memory_space<vmem>>, %arg12: memref<64x64xf32, #tpu.memory_space<vmem>>, %arg13: memref<1x64xf32, #tpu.memory_space<vmem>>, %arg14: memref<1x64xf32, #tpu.memory_space<vmem>>, %arg15: memref<1x1xf32, #tpu.memory_space<vmem>>, %arg16: memref<8x1xf32, #tpu.memory_space<vmem>>, %arg17: memref<2x64xf32, #tpu.memory_space<vmem>>, %arg18: memref<2x64xf32, #tpu.memory_space<vmem>>, %arg19: memref<8x64xf32, #tpu.memory_space<vmem>>) attributes {dimension_semantics = [], scalar_prefetch = 0 : i64, scratch_operands = 1 : i64, tpu.core_type = #tpu.core_type<tc>} {
    %c0 = arith.constant 0 : index
    %c0_0 = arith.constant 0 : index
    %0 = vector.load %arg0[%c0, %c0_0] : memref<8x64xf32, #tpu.memory_space<vmem>>, vector<8x64xf32>
    %c0_1 = arith.constant 0 : index
    %c0_2 = arith.constant 0 : index
    %1 = vector.load %arg2[%c0_1, %c0_2] : memref<64x128xf32, #tpu.memory_space<vmem>>, vector<64x128xf32>
    %cst = arith.constant dense<0.000000e+00> : vector<8x128xf32>
    %2 = tpu.matmul %0, %1, %cst {dimension_numbers = #tpu.dot_dimension_numbers<[1], [0], [0], [1], [0, 0, 1, 1], [], []>} : vector<8x64xf32>, vector<64x128xf32>, vector<8x128xf32> -> vector<8x128xf32>
    %c0_3 = arith.constant 0 : index
    %c0_4 = arith.constant 0 : index
    %3 = vector.load %arg3[%c0_3, %c0_4] : memref<1x128xf32, #tpu.memory_space<vmem>>, vector<1x128xf32>
    %4 = vector.broadcast %3 : vector<1x128xf32> to vector<8x128xf32>
    %5 = arith.addf %2, %4 : vector<8x128xf32>
    %cst_5 = arith.constant 0.000000e+00 : f32
    %6 = vector.broadcast %cst_5 : f32 to vector<8x128xf32>
    %7 = arith.maximumf %5, %6 : vector<8x128xf32>
    %c0_6 = arith.constant 0 : index
    %c0_7 = arith.constant 0 : index
    %8 = vector.load %arg4[%c0_6, %c0_7] : memref<128x256xf32, #tpu.memory_space<vmem>>, vector<128x256xf32>
    %cst_8 = arith.constant dense<0.000000e+00> : vector<8x256xf32>
    %9 = tpu.matmul %7, %8, %cst_8 {dimension_numbers = #tpu.dot_dimension_numbers<[1], [0], [0], [1], [0, 0, 1, 1], [], []>} : vector<8x128xf32>, vector<128x256xf32>, vector<8x256xf32> -> vector<8x256xf32>
    %c0_9 = arith.constant 0 : index
    %c0_10 = arith.constant 0 : index
    %10 = vector.load %arg1[%c0_9, %c0_10] : memref<8x7xf32, #tpu.memory_space<vmem>>, vector<8x7xf32>
    %c0_11 = arith.constant 0 : index
    %c0_12 = arith.constant 0 : index
    %11 = vector.load %arg5[%c0_11, %c0_12] : memref<7x256xf32, #tpu.memory_space<vmem>>, vector<7x256xf32>
    %cst_13 = arith.constant dense<0.000000e+00> : vector<8x256xf32>
    %12 = tpu.matmul %10, %11, %cst_13 {dimension_numbers = #tpu.dot_dimension_numbers<[1], [0], [0], [1], [0, 0, 1, 1], [], []>} : vector<8x7xf32>, vector<7x256xf32>, vector<8x256xf32> -> vector<8x256xf32>
    %13 = arith.addf %9, %12 : vector<8x256xf32>
    %c0_14 = arith.constant 0 : index
    %c0_15 = arith.constant 0 : index
    %14 = vector.load %arg6[%c0_14, %c0_15] : memref<1x256xf32, #tpu.memory_space<vmem>>, vector<1x256xf32>
    %15 = vector.broadcast %14 : vector<1x256xf32> to vector<8x256xf32>
    %16 = arith.addf %13, %15 : vector<8x256xf32>
    %c0_16 = arith.constant 0 : index
    %c0_17 = arith.constant 0 : index
    %17 = vector.load %arg7[%c0_16, %c0_17] : memref<64x256xf32, #tpu.memory_space<vmem>>, vector<64x256xf32>
    %c0_18 = arith.constant 0 : index
    %c0_19 = arith.constant 0 : index
    %18 = vector.load %arg8[%c0_18, %c0_19] : memref<2x64xf32, #tpu.memory_space<vmem>>, vector<2x64xf32>
    %c0_20 = arith.constant 0 : index
    %c0_21 = arith.constant 0 : index
    %19 = vector.load %arg9[%c0_20, %c0_21] : memref<2x64xf32, #tpu.memory_space<vmem>>, vector<2x64xf32>
    %20 = vector.extract_strided_slice %16 {offsets = [0, 0], sizes = [2, 256], strides = [1, 1]} : vector<8x256xf32> to vector<2x256xf32>
    %cst_22 = arith.constant dense<0.000000e+00> : vector<2x256xf32>
    %21 = tpu.matmul %18, %17, %cst_22 {dimension_numbers = #tpu.dot_dimension_numbers<[1], [0], [0], [1], [0, 0, 1, 1], [], []>} : vector<2x64xf32>, vector<64x256xf32>, vector<2x256xf32> -> vector<2x256xf32>
    %22 = arith.addf %20, %21 : vector<2x256xf32>
    %23 = vector.extract_strided_slice %22 {offsets = [0, 0], sizes = [2, 64], strides = [1, 1]} : vector<2x256xf32> to vector<2x64xf32>
    %24 = arith.negf %23 : vector<2x64xf32>
    %25 = math.exp %24 : vector<2x64xf32>
    %cst_23 = arith.constant 1.000000e+00 : f32
    %26 = vector.broadcast %cst_23 : f32 to vector<2x64xf32>
    %27 = arith.addf %26, %25 : vector<2x64xf32>
    %28 = arith.divf %26, %27 : vector<2x64xf32>
    %29 = vector.extract_strided_slice %22 {offsets = [0, 64], sizes = [2, 64], strides = [1, 1]} : vector<2x256xf32> to vector<2x64xf32>
    %30 = arith.negf %29 : vector<2x64xf32>
    %31 = math.exp %30 : vector<2x64xf32>
    %cst_24 = arith.constant 1.000000e+00 : f32
    %32 = vector.broadcast %cst_24 : f32 to vector<2x64xf32>
    %33 = arith.addf %32, %31 : vector<2x64xf32>
    %34 = arith.divf %32, %33 : vector<2x64xf32>
    %35 = vector.extract_strided_slice %22 {offsets = [0, 128], sizes = [2, 64], strides = [1, 1]} : vector<2x256xf32> to vector<2x64xf32>
    %36 = math.tanh %35 : vector<2x64xf32>
    %37 = vector.extract_strided_slice %22 {offsets = [0, 192], sizes = [2, 64], strides = [1, 1]} : vector<2x256xf32> to vector<2x64xf32>
    %38 = arith.negf %37 : vector<2x64xf32>
    %39 = math.exp %38 : vector<2x64xf32>
    %cst_25 = arith.constant 1.000000e+00 : f32
    %40 = vector.broadcast %cst_25 : f32 to vector<2x64xf32>
    %41 = arith.addf %40, %39 : vector<2x64xf32>
    %42 = arith.divf %40, %41 : vector<2x64xf32>
    %43 = arith.mulf %34, %19 : vector<2x64xf32>
    %44 = arith.mulf %28, %36 : vector<2x64xf32>
    %45 = arith.addf %43, %44 : vector<2x64xf32>
    %46 = math.tanh %45 : vector<2x64xf32>
    %47 = arith.mulf %42, %46 : vector<2x64xf32>
    %c0_26 = arith.constant 0 : index
    %c0_27 = arith.constant 0 : index
    %48 = vector.load %arg19[%c0_26, %c0_27] : memref<8x64xf32, #tpu.memory_space<vmem>>, vector<2x64xf32>
    tpu.vector_store %arg19[%c0_26, %c0_27], %47 {strides = array<i32>} : memref<8x64xf32, #tpu.memory_space<vmem>>, vector<2x64xf32>,
    %49 = vector.extract_strided_slice %16 {offsets = [2, 0], sizes = [2, 256], strides = [1, 1]} : vector<8x256xf32> to vector<2x256xf32>
    %cst_28 = arith.constant dense<0.000000e+00> : vector<2x256xf32>
    %50 = tpu.matmul %47, %17, %cst_28 {dimension_numbers = #tpu.dot_dimension_numbers<[1], [0], [0], [1], [0, 0, 1, 1], [], []>} : vector<2x64xf32>, vector<64x256xf32>, vector<2x256xf32> -> vector<2x256xf32>
    %51 = arith.addf %49, %50 : vector<2x256xf32>
    %52 = vector.extract_strided_slice %51 {offsets = [0, 0], sizes = [2, 64], strides = [1, 1]} : vector<2x256xf32> to vector<2x64xf32>
    %53 = arith.negf %52 : vector<2x64xf32>
    %54 = math.exp %53 : vector<2x64xf32>
    %cst_29 = arith.constant 1.000000e+00 : f32
    %55 = vector.broadcast %cst_29 : f32 to vector<2x64xf32>
    %56 = arith.addf %55, %54 : vector<2x64xf32>
    %57 = arith.divf %55, %56 : vector<2x64xf32>
    %58 = vector.extract_strided_slice %51 {offsets = [0, 64], sizes = [2, 64], strides = [1, 1]} : vector<2x256xf32> to vector<2x64xf32>
    %59 = arith.negf %58 : vector<2x64xf32>
    %60 = math.exp %59 : vector<2x64xf32>
    %cst_30 = arith.constant 1.000000e+00 : f32
    %61 = vector.broadcast %cst_30 : f32 to vector<2x64xf32>
    %62 = arith.addf %61, %60 : vector<2x64xf32>
    %63 = arith.divf %61, %62 : vector<2x64xf32>
    %64 = vector.extract_strided_slice %51 {offsets = [0, 128], sizes = [2, 64], strides = [1, 1]} : vector<2x256xf32> to vector<2x64xf32>
    %65 = math.tanh %64 : vector<2x64xf32>
    %66 = vector.extract_strided_slice %51 {offsets = [0, 192], sizes = [2, 64], strides = [1, 1]} : vector<2x256xf32> to vector<2x64xf32>
    %67 = arith.negf %66 : vector<2x64xf32>
    %68 = math.exp %67 : vector<2x64xf32>
    %cst_31 = arith.constant 1.000000e+00 : f32
    %69 = vector.broadcast %cst_31 : f32 to vector<2x64xf32>
    %70 = arith.addf %69, %68 : vector<2x64xf32>
    %71 = arith.divf %69, %70 : vector<2x64xf32>
    %72 = arith.mulf %63, %45 : vector<2x64xf32>
    %73 = arith.mulf %57, %65 : vector<2x64xf32>
    %74 = arith.addf %72, %73 : vector<2x64xf32>
    %75 = math.tanh %74 : vector<2x64xf32>
    %76 = arith.mulf %71, %75 : vector<2x64xf32>
    %c2 = arith.constant 2 : index
    %c0_32 = arith.constant 0 : index
    %77 = vector.load %arg19[%c2, %c0_32] : memref<8x64xf32, #tpu.memory_space<vmem>>, vector<2x64xf32>
    tpu.vector_store %arg19[%c2, %c0_32], %76 {strides = array<i32>} : memref<8x64xf32, #tpu.memory_space<vmem>>, vector<2x64xf32>,
    %78 = vector.extract_strided_slice %16 {offsets = [4, 0], sizes = [2, 256], strides = [1, 1]} : vector<8x256xf32> to vector<2x256xf32>
    %cst_33 = arith.constant dense<0.000000e+00> : vector<2x256xf32>
    %79 = tpu.matmul %76, %17, %cst_33 {dimension_numbers = #tpu.dot_dimension_numbers<[1], [0], [0], [1], [0, 0, 1, 1], [], []>} : vector<2x64xf32>, vector<64x256xf32>, vector<2x256xf32> -> vector<2x256xf32>
    %80 = arith.addf %78, %79 : vector<2x256xf32>
    %81 = vector.extract_strided_slice %80 {offsets = [0, 0], sizes = [2, 64], strides = [1, 1]} : vector<2x256xf32> to vector<2x64xf32>
    %82 = arith.negf %81 : vector<2x64xf32>
    %83 = math.exp %82 : vector<2x64xf32>
    %cst_34 = arith.constant 1.000000e+00 : f32
    %84 = vector.broadcast %cst_34 : f32 to vector<2x64xf32>
    %85 = arith.addf %84, %83 : vector<2x64xf32>
    %86 = arith.divf %84, %85 : vector<2x64xf32>
    %87 = vector.extract_strided_slice %80 {offsets = [0, 64], sizes = [2, 64], strides = [1, 1]} : vector<2x256xf32> to vector<2x64xf32>
    %88 = arith.negf %87 : vector<2x64xf32>
    %89 = math.exp %88 : vector<2x64xf32>
    %cst_35 = arith.constant 1.000000e+00 : f32
    %90 = vector.broadcast %cst_35 : f32 to vector<2x64xf32>
    %91 = arith.addf %90, %89 : vector<2x64xf32>
    %92 = arith.divf %90, %91 : vector<2x64xf32>
    %93 = vector.extract_strided_slice %80 {offsets = [0, 128], sizes = [2, 64], strides = [1, 1]} : vector<2x256xf32> to vector<2x64xf32>
    %94 = math.tanh %93 : vector<2x64xf32>
    %95 = vector.extract_strided_slice %80 {offsets = [0, 192], sizes = [2, 64], strides = [1, 1]} : vector<2x256xf32> to vector<2x64xf32>
    %96 = arith.negf %95 : vector<2x64xf32>
    %97 = math.exp %96 : vector<2x64xf32>
    %cst_36 = arith.constant 1.000000e+00 : f32
    %98 = vector.broadcast %cst_36 : f32 to vector<2x64xf32>
    %99 = arith.addf %98, %97 : vector<2x64xf32>
    %100 = arith.divf %98, %99 : vector<2x64xf32>
    %101 = arith.mulf %92, %74 : vector<2x64xf32>
    %102 = arith.mulf %86, %94 : vector<2x64xf32>
    %103 = arith.addf %101, %102 : vector<2x64xf32>
    %104 = math.tanh %103 : vector<2x64xf32>
    %105 = arith.mulf %100, %104 : vector<2x64xf32>
    %c4 = arith.constant 4 : index
    %c0_37 = arith.constant 0 : index
    %106 = vector.load %arg19[%c4, %c0_37] : memref<8x64xf32, #tpu.memory_space<vmem>>, vector<2x64xf32>
    tpu.vector_store %arg19[%c4, %c0_37], %105 {strides = array<i32>} : memref<8x64xf32, #tpu.memory_space<vmem>>, vector<2x64xf32>,
    %107 = vector.extract_strided_slice %16 {offsets = [6, 0], sizes = [2, 256], strides = [1, 1]} : vector<8x256xf32> to vector<2x256xf32>
    %cst_38 = arith.constant dense<0.000000e+00> : vector<2x256xf32>
    %108 = tpu.matmul %105, %17, %cst_38 {dimension_numbers = #tpu.dot_dimension_numbers<[1], [0], [0], [1], [0, 0, 1, 1], [], []>} : vector<2x64xf32>, vector<64x256xf32>, vector<2x256xf32> -> vector<2x256xf32>
    %109 = arith.addf %107, %108 : vector<2x256xf32>
    %110 = vector.extract_strided_slice %109 {offsets = [0, 0], sizes = [2, 64], strides = [1, 1]} : vector<2x256xf32> to vector<2x64xf32>
    %111 = arith.negf %110 : vector<2x64xf32>
    %112 = math.exp %111 : vector<2x64xf32>
    %cst_39 = arith.constant 1.000000e+00 : f32
    %113 = vector.broadcast %cst_39 : f32 to vector<2x64xf32>
    %114 = arith.addf %113, %112 : vector<2x64xf32>
    %115 = arith.divf %113, %114 : vector<2x64xf32>
    %116 = vector.extract_strided_slice %109 {offsets = [0, 64], sizes = [2, 64], strides = [1, 1]} : vector<2x256xf32> to vector<2x64xf32>
    %117 = arith.negf %116 : vector<2x64xf32>
    %118 = math.exp %117 : vector<2x64xf32>
    %cst_40 = arith.constant 1.000000e+00 : f32
    %119 = vector.broadcast %cst_40 : f32 to vector<2x64xf32>
    %120 = arith.addf %119, %118 : vector<2x64xf32>
    %121 = arith.divf %119, %120 : vector<2x64xf32>
    %122 = vector.extract_strided_slice %109 {offsets = [0, 128], sizes = [2, 64], strides = [1, 1]} : vector<2x256xf32> to vector<2x64xf32>
    %123 = math.tanh %122 : vector<2x64xf32>
    %124 = vector.extract_strided_slice %109 {offsets = [0, 192], sizes = [2, 64], strides = [1, 1]} : vector<2x256xf32> to vector<2x64xf32>
    %125 = arith.negf %124 : vector<2x64xf32>
    %126 = math.exp %125 : vector<2x64xf32>
    %cst_41 = arith.constant 1.000000e+00 : f32
    %127 = vector.broadcast %cst_41 : f32 to vector<2x64xf32>
    %128 = arith.addf %127, %126 : vector<2x64xf32>
    %129 = arith.divf %127, %128 : vector<2x64xf32>
    %130 = arith.mulf %121, %103 : vector<2x64xf32>
    %131 = arith.mulf %115, %123 : vector<2x64xf32>
    %132 = arith.addf %130, %131 : vector<2x64xf32>
    %133 = math.tanh %132 : vector<2x64xf32>
    %134 = arith.mulf %129, %133 : vector<2x64xf32>
    %c6 = arith.constant 6 : index
    %c0_42 = arith.constant 0 : index
    %135 = vector.load %arg19[%c6, %c0_42] : memref<8x64xf32, #tpu.memory_space<vmem>>, vector<2x64xf32>
    tpu.vector_store %arg19[%c6, %c0_42], %134 {strides = array<i32>} : memref<8x64xf32, #tpu.memory_space<vmem>>, vector<2x64xf32>,
    %c0_43 = arith.constant 0 : index
    %c0_44 = arith.constant 0 : index
    %136 = vector.load %arg17[%c0_43, %c0_44] : memref<2x64xf32, #tpu.memory_space<vmem>>, vector<2x64xf32>
    tpu.vector_store %arg17[%c0_43, %c0_44], %134 {strides = array<i32>} : memref<2x64xf32, #tpu.memory_space<vmem>>, vector<2x64xf32>,
    %c0_45 = arith.constant 0 : index
    %c0_46 = arith.constant 0 : index
    %137 = vector.load %arg18[%c0_45, %c0_46] : memref<2x64xf32, #tpu.memory_space<vmem>>, vector<2x64xf32>
    tpu.vector_store %arg18[%c0_45, %c0_46], %132 {strides = array<i32>} : memref<2x64xf32, #tpu.memory_space<vmem>>, vector<2x64xf32>,
    %c0_47 = arith.constant 0 : index
    %c0_48 = arith.constant 0 : index
    %138 = vector.load %arg19[%c0_47, %c0_48] : memref<8x64xf32, #tpu.memory_space<vmem>>, vector<8x64xf32>
    %c0_49 = arith.constant 0 : index
    %c0_50 = arith.constant 0 : index
    %139 = vector.load %arg10[%c0_49, %c0_50] : memref<64x64xf32, #tpu.memory_space<vmem>>, vector<64x64xf32>
    %cst_51 = arith.constant dense<0.000000e+00> : vector<8x64xf32>
    %140 = tpu.matmul %138, %139, %cst_51 {dimension_numbers = #tpu.dot_dimension_numbers<[1], [0], [0], [1], [0, 0, 1, 1], [], []>} : vector<8x64xf32>, vector<64x64xf32>, vector<8x64xf32> -> vector<8x64xf32>
    %c0_52 = arith.constant 0 : index
    %c0_53 = arith.constant 0 : index
    %141 = vector.load %arg11[%c0_52, %c0_53] : memref<1x64xf32, #tpu.memory_space<vmem>>, vector<1x64xf32>
    %142 = vector.broadcast %141 : vector<1x64xf32> to vector<8x64xf32>
    %143 = arith.addf %140, %142 : vector<8x64xf32>
    %cst_54 = arith.constant 0.000000e+00 : f32
    %144 = vector.broadcast %cst_54 : f32 to vector<8x64xf32>
    %145 = arith.maximumf %143, %144 : vector<8x64xf32>
    %c0_55 = arith.constant 0 : index
    %c0_56 = arith.constant 0 : index
    %146 = vector.load %arg12[%c0_55, %c0_56] : memref<64x64xf32, #tpu.memory_space<vmem>>, vector<64x64xf32>
    %cst_57 = arith.constant dense<0.000000e+00> : vector<8x64xf32>
    %147 = tpu.matmul %145, %146, %cst_57 {dimension_numbers = #tpu.dot_dimension_numbers<[1], [0], [0], [1], [0, 0, 1, 1], [], []>} : vector<8x64xf32>, vector<64x64xf32>, vector<8x64xf32> -> vector<8x64xf32>
    %c0_58 = arith.constant 0 : index
    %c0_59 = arith.constant 0 : index
    %148 = vector.load %arg13[%c0_58, %c0_59] : memref<1x64xf32, #tpu.memory_space<vmem>>, vector<1x64xf32>
    %149 = vector.broadcast %148 : vector<1x64xf32> to vector<8x64xf32>
    %150 = arith.addf %147, %149 : vector<8x64xf32>
    %cst_60 = arith.constant 0.000000e+00 : f32
    %151 = vector.broadcast %cst_60 : f32 to vector<8x64xf32>
    %152 = arith.maximumf %150, %151 : vector<8x64xf32>
    %c0_61 = arith.constant 0 : index
    %c0_62 = arith.constant 0 : index
    %153 = vector.load %arg14[%c0_61, %c0_62] : memref<1x64xf32, #tpu.memory_space<vmem>>, vector<1x64xf32>
    %154 = vector.broadcast %153 : vector<1x64xf32> to vector<8x64xf32>
    %155 = arith.mulf %152, %154 : vector<8x64xf32>
    %cst_63 = arith.constant dense<0.000000e+00> : vector<8xf32>
    %156 = vector.multi_reduction <add>, %155, %cst_63 [1] : vector<8x64xf32> to vector<8xf32>
    %157 = vector.shape_cast %156 : vector<8xf32> to vector<8x1xf32>
    %c0_64 = arith.constant 0 : index
    %c0_65 = arith.constant 0 : index
    %158 = vector.load %arg15[%c0_64, %c0_65] : memref<1x1xf32, #tpu.memory_space<vmem>>, vector<1x1xf32>
    %159 = vector.broadcast %158 : vector<1x1xf32> to vector<8x1xf32>
    %160 = arith.addf %157, %159 : vector<8x1xf32>
    %c0_66 = arith.constant 0 : index
    %c0_67 = arith.constant 0 : index
    %161 = vector.load %arg16[%c0_66, %c0_67] : memref<8x1xf32, #tpu.memory_space<vmem>>, vector<8x1xf32>
    tpu.vector_store %arg16[%c0_66, %c0_67], %160 {strides = array<i32>} : memref<8x1xf32, #tpu.memory_space<vmem>>, vector<8x1xf32>,
    return
  }
}

</mosaic_0001>

<llo_original>
// kernel: qconvlstm_forward.3
$region0: #{qconvlstm_forward.3}
  #allocation0 [shape = 'u32[]', space=smem, size = 0x4, offset = 0x4, fixed_abs, tag = 'smem constant byte address 0x4 - core index']
  #allocation1 [shape = 'u32[72,128]{1,0:T(1,128)}', space=vmem, size = 0x9000, scoped, tag = 'internal scratch']
  %s0 = inlined_call_operand.vmem [shape: f32[128,256], index: 0, kind: input, shape index: {}]
  %s1 = inlined_call_operand.vmem [shape: f32[256,8], index: 1, kind: input, shape index: {}]
  %s2 = inlined_call_operand.vmem [shape: f32[1,8], index: 2, kind: input, shape index: {}]
  %s3 = inlined_call_operand.vmem [shape: f32[128,8], index: 3, kind: output, shape index: {}]
  %s4 = sld [smem:[#allocation0]]
  $region22: #{qconvlstm_forward.3} parent=0
    _
  %s6 = ssub.s32 1, %s4
  %s7 = scalar_select 0, %s6, %s4
  // Predicated region
  $region2: #{qconvlstm_forward.3} parent=0 // pred_check
    _
  $region3: #{qconvlstm_forward.3} parent=0 // pred_check_branch
    %9 = sbr.rel (0) target = $region5
  $region4: #{qconvlstm_forward.3} parent=0 // pred_region
    _
  $region5: #{qconvlstm_forward.3} parent=0 // pred_fallthru
    _
  // Predicated region
  $region6: #{qconvlstm_forward.3} parent=0 // pred_check
    _
  $region7: #{qconvlstm_forward.3} parent=0 // pred_check_branch
    %11 = sbr.rel (0) target = $region9
  $region8: #{qconvlstm_forward.3} parent=0 // pred_region
    _
  $region9: #{qconvlstm_forward.3} parent=0 // pred_fallthru
    _
  // Predicated region
  $region10: #{qconvlstm_forward.3} parent=0 // pred_check
    _
  $region11: #{qconvlstm_forward.3} parent=0 // pred_check_branch
    %13 = sbr.rel (0) target = $region13
  $region12: #{qconvlstm_forward.3} parent=0 // pred_region
    _
  $region13: #{qconvlstm_forward.3} parent=0 // pred_fallthru
    _
  %v14 = vld [vmem:[%s0] sm:$0xff]
  %v15 = vld [vmem:[%s0 + $0x8] sm:$0xff]
  %v16 = vld [vmem:[%s0 + $0x10] sm:$0xff]
  %v17 = vld [vmem:[%s0 + $0x18] sm:$0xff]
  %v18 = vld [vmem:[%s0 + $0x20] sm:$0xff]
  %v19 = vld [vmem:[%s0 + $0x28] sm:$0xff]
  %v20 = vld [vmem:[%s0 + $0x30] sm:$0xff]
  %v21 = vld [vmem:[%s0 + $0x38] sm:$0xff]
  %v22 = vld [vmem:[%s0 + $0x40] sm:$0xff]
  %v23 = vld [vmem:[%s0 + $0x48] sm:$0xff]
  %v24 = vld [vmem:[%s0 + $0x50] sm:$0xff]
  %v25 = vld [vmem:[%s0 + $0x58] sm:$0xff]
  %v26 = vld [vmem:[%s0 + $0x60] sm:$0xff]
  %v27 = vld [vmem:[%s0 + $0x68] sm:$0xff]
  %v28 = vld [vmem:[%s0 + $0x70] sm:$0xff]
  %v29 = vld [vmem:[%s0 + $0x78] sm:$0xff]
  %v30 = vld [vmem:[%s0 + $0x80] sm:$0xff]
  %v31 = vld [vmem:[%s0 + $0x88] sm:$0xff]
  %v32 = vld [vmem:[%s0 + $0x90] sm:$0xff]
  %v33 = vld [vmem:[%s0 + $0x98] sm:$0xff]
  %v34 = vld [vmem:[%s0 + $0xa0] sm:$0xff]
  %v35 = vld [vmem:[%s0 + $0xa8] sm:$0xff]
  %v36 = vld [vmem:[%s0 + $0xb0] sm:$0xff]
  %v37 = vld [vmem:[%s0 + $0xb8] sm:$0xff]
  %v38 = vld [vmem:[%s0 + $0xc0] sm:$0xff]
  %v39 = vld [vmem:[%s0 + $0xc8] sm:$0xff]
  %v40 = vld [vmem:[%s0 + $0xd0] sm:$0xff]
  %v41 = vld [vmem:[%s0 + $0xd8] sm:$0xff]
  %v42 = vld [vmem:[%s0 + $0xe0] sm:$0xff]
  %v43 = vld [vmem:[%s0 + $0xe8] sm:$0xff]
  %v44 = vld [vmem:[%s0 + $0xf0] sm:$0xff]
  %v45 = vld [vmem:[%s0 + $0xf8] sm:$0xff]
  %v46 = vld [vmem:[%s1] sm:$0xff]
  %v47 = vld [vmem:[%s1 + $0x8] sm:$0xff]
  %v48 = vld [vmem:[%s1 + $0x10] sm:$0xff]
  %v49 = vld [vmem:[%s1 + $0x18] sm:$0xff]
  %v50 = vld [vmem:[%s1 + $0x20] sm:$0xff]
  %v51 = vld [vmem:[%s1 + $0x28] sm:$0xff]
  %v52 = vld [vmem:[%s1 + $0x30] sm:$0xff]
  %v53 = vld [vmem:[%s1 + $0x38] sm:$0xff]
  %v54 = vld [vmem:[%s1 + $0x40] sm:$0xff]
  %v55 = vld [vmem:[%s1 + $0x48] sm:$0xff]
  %v56 = vld [vmem:[%s1 + $0x50] sm:$0xff]
  %v57 = vld [vmem:[%s1 + $0x58] sm:$0xff]
  %v58 = vld [vmem:[%s1 + $0x60] sm:$0xff]
  %v59 = vld [vmem:[%s1 + $0x68] sm:$0xff]
  %v60 = vld [vmem:[%s1 + $0x70] sm:$0xff]
  %v61 = vld [vmem:[%s1 + $0x78] sm:$0xff]
  %v62 = vld [vmem:[%s1 + $0x80] sm:$0xff]
  %v63 = vld [vmem:[%s1 + $0x88] sm:$0xff]
  %v64 = vld [vmem:[%s1 + $0x90] sm:$0xff]
  %v65 = vld [vmem:[%s1 + $0x98] sm:$0xff]
  %v66 = vld [vmem:[%s1 + $0xa0] sm:$0xff]
  %v67 = vld [vmem:[%s1 + $0xa8] sm:$0xff]
  %v68 = vld [vmem:[%s1 + $0xb0] sm:$0xff]
  %v69 = vld [vmem:[%s1 + $0xb8] sm:$0xff]
  %v70 = vld [vmem:[%s1 + $0xc0] sm:$0xff]
  %v71 = vld [vmem:[%s1 + $0xc8] sm:$0xff]
  %v72 = vld [vmem:[%s1 + $0xd0] sm:$0xff]
  %v73 = vld [vmem:[%s1 + $0xd8] sm:$0xff]
  %v74 = vld [vmem:[%s1 + $0xe0] sm:$0xff]
  %v75 = vld [vmem:[%s1 + $0xe8] sm:$0xff]
  %v76 = vld [vmem:[%s1 + $0xf0] sm:$0xff]
  %v77 = vld [vmem:[%s1 + $0xf8] sm:$0xff]
  %v78 = vld [vmem:[%s2] sm:$0x1]
  %v80 = vperm.slane %v78, 0
  %82 = vmatpush.msra.mxu0 %v61
  %83 = vmatpush.msra.mxu0 %v60
  %84 = vmatpush.msra.mxu0 %v59
  %85 = vmatpush.msra.mxu0 %v58
  %86 = vmatpush.msra.mxu0 %v57
  %87 = vmatpush.msra.mxu0 %v56
  %88 = vmatpush.msra.mxu0 %v55
  %89 = vmatpush.msra.mxu0 %v54
  %90 = vmatpush.msra.mxu0 %v53
  %91 = vmatpush.msra.mxu0 %v52
  %92 = vmatpush.msra.mxu0 %v51
  %93 = vmatpush.msra.mxu0 %v50
  %94 = vmatpush.msra.mxu0 %v49
  %95 = vmatpush.msra.mxu0 %v48
  %96 = vmatpush.msra.mxu0 %v47
  %97 = vmatpush.msra.mxu0 %v46
  %98 = vmatmul.f32.gmra.mxu0 %v14
  %v99 = vpop.f32.mrf.mxu0
  %v100 = vadd.f32 %v80, %v99
  %101 = vmatmul.f32.gmra.mxu0 %v16
  %v102 = vpop.f32.mrf.mxu0
  %v103 = vadd.f32 %v80, %v102
  %104 = vmatmul.f32.gmra.mxu0 %v18
  %v105 = vpop.f32.mrf.mxu0
  %v106 = vadd.f32 %v80, %v105
  %107 = vmatmul.f32.gmra.mxu0 %v20
  %v108 = vpop.f32.mrf.mxu0
  %v109 = vadd.f32 %v80, %v108
  %110 = vmatmul.f32.gmra.mxu0 %v22
  %v111 = vpop.f32.mrf.mxu0
  %v112 = vadd.f32 %v80, %v111
  %113 = vmatmul.f32.gmra.mxu0 %v24
  %v114 = vpop.f32.mrf.mxu0
  %v115 = vadd.f32 %v80, %v114
  %116 = vmatmul.f32.gmra.mxu0 %v26
  %v117 = vpop.f32.mrf.mxu0
  %v118 = vadd.f32 %v80, %v117
  %119 = vmatmul.f32.gmra.mxu0 %v28
  %v120 = vpop.f32.mrf.mxu0
  %v121 = vadd.f32 %v80, %v120
  %122 = vmatmul.f32.gmra.mxu0 %v30
  %v123 = vpop.f32.mrf.mxu0
  %v124 = vadd.f32 %v80, %v123
  %125 = vmatmul.f32.gmra.mxu0 %v32
  %v126 = vpop.f32.mrf.mxu0
  %v127 = vadd.f32 %v80, %v126
  %128 = vmatmul.f32.gmra.mxu0 %v34
  %v129 = vpop.f32.mrf.mxu0
  %v130 = vadd.f32 %v80, %v129
  %131 = vmatmul.f32.gmra.mxu0 %v36
  %v132 = vpop.f32.mrf.mxu0
  %v133 = vadd.f32 %v80, %v132
  %134 = vmatmul.f32.gmra.mxu0 %v38
  %v135 = vpop.f32.mrf.mxu0
  %v136 = vadd.f32 %v80, %v135
  %137 = vmatmul.f32.gmra.mxu0 %v40
  %v138 = vpop.f32.mrf.mxu0
  %v139 = vadd.f32 %v80, %v138
  %140 = vmatmul.f32.gmra.mxu0 %v42
  %v141 = vpop.f32.mrf.mxu0
  %v142 = vadd.f32 %v80, %v141
  %143 = vmatmul.f32.gmra.mxu0 %v44
  %v144 = vpop.f32.mrf.mxu0
  %v145 = vadd.f32 %v80, %v144
  %146 = vdwg.mxu0
  %147 = vmatpush.msra.mxu0 %v77
  %148 = vmatpush.msra.mxu0 %v76
  %149 = vmatpush.msra.mxu0 %v75
  %150 = vmatpush.msra.mxu0 %v74
  %151 = vmatpush.msra.mxu0 %v73
  %152 = vmatpush.msra.mxu0 %v72
  %153 = vmatpush.msra.mxu0 %v71
  %154 = vmatpush.msra.mxu0 %v70
  %155 = vmatpush.msra.mxu0 %v69
  %156 = vmatpush.msra.mxu0 %v68
  %157 = vmatpush.msra.mxu0 %v67
  %158 = vmatpush.msra.mxu0 %v66
  %159 = vmatpush.msra.mxu0 %v65
  %160 = vmatpush.msra.mxu0 %v64
  %161 = vmatpush.msra.mxu0 %v63
  %162 = vmatpush.msra.mxu0 %v62
  %163 = vmatmul.f32.gmra.mxu0 %v15
  %v164 = vpop.f32.mrf.mxu0
  %v165 = vadd.f32 %v100, %v164
  %166 = vmatmul.f32.gmra.mxu0 %v17
  %v167 = vpop.f32.mrf.mxu0
  %v168 = vadd.f32 %v103, %v167
  %169 = vmatmul.f32.gmra.mxu0 %v19
  %v170 = vpop.f32.mrf.mxu0
  %v171 = vadd.f32 %v106, %v170
  %172 = vmatmul.f32.gmra.mxu0 %v21
  %v173 = vpop.f32.mrf.mxu0
  %v174 = vadd.f32 %v109, %v173
  %175 = vmatmul.f32.gmra.mxu0 %v23
  %v176 = vpop.f32.mrf.mxu0
  %v177 = vadd.f32 %v112, %v176
  %178 = vmatmul.f32.gmra.mxu0 %v25
  %v179 = vpop.f32.mrf.mxu0
  %v180 = vadd.f32 %v115, %v179
  %181 = vmatmul.f32.gmra.mxu0 %v27
  %v182 = vpop.f32.mrf.mxu0
  %v183 = vadd.f32 %v118, %v182
  %184 = vmatmul.f32.gmra.mxu0 %v29
  %v185 = vpop.f32.mrf.mxu0
  %v186 = vadd.f32 %v121, %v185
  %187 = vmatmul.f32.gmra.mxu0 %v31
  %v188 = vpop.f32.mrf.mxu0
  %v189 = vadd.f32 %v124, %v188
  %190 = vmatmul.f32.gmra.mxu0 %v33
  %v191 = vpop.f32.mrf.mxu0
  %v192 = vadd.f32 %v127, %v191
  %193 = vmatmul.f32.gmra.mxu0 %v35
  %v194 = vpop.f32.mrf.mxu0
  %v195 = vadd.f32 %v130, %v194
  %196 = vmatmul.f32.gmra.mxu0 %v37
  %v197 = vpop.f32.mrf.mxu0
  %v198 = vadd.f32 %v133, %v197
  %199 = vmatmul.f32.gmra.mxu0 %v39
  %v200 = vpop.f32.mrf.mxu0
  %v201 = vadd.f32 %v136, %v200
  %202 = vmatmul.f32.gmra.mxu0 %v41
  %v203 = vpop.f32.mrf.mxu0
  %v204 = vadd.f32 %v139, %v203
  %205 = vmatmul.f32.gmra.mxu0 %v43
  %v206 = vpop.f32.mrf.mxu0
  %v207 = vadd.f32 %v142, %v206
  %208 = vmatmul.f32.gmra.mxu0 %v45
  %v209 = vpop.f32.mrf.mxu0
  %v210 = vadd.f32 %v145, %v209
  %211 = vdwg.mxu0
  %v212 = vmax.f32 %v165, 0.0
  %v213 = vmax.f32 %v168, 0.0
  %v214 = vmax.f32 %v171, 0.0
  %v215 = vmax.f32 %v174, 0.0
  %v216 = vmax.f32 %v177, 0.0
  %v217 = vmax.f32 %v180, 0.0
  %v218 = vmax.f32 %v183, 0.0
  %v219 = vmax.f32 %v186, 0.0
  %v220 = vmax.f32 %v189, 0.0
  %v221 = vmax.f32 %v192, 0.0
  %v222 = vmax.f32 %v195, 0.0
  %v223 = vmax.f32 %v198, 0.0
  %v224 = vmax.f32 %v201, 0.0
  %v225 = vmax.f32 %v204, 0.0
  %v226 = vmax.f32 %v207, 0.0
  %v227 = vmax.f32 %v210, 0.0
  %vm228 = vcmask 64512
  %229 = vst.msk [vmem:[%s3] sm:$0xff] %vm228, %v212
  %230 = vst.msk [vmem:[%s3 + $0x8] sm:$0xff] %vm228, %v213
  %231 = vst.msk [vmem:[%s3 + $0x10] sm:$0xff] %vm228, %v214
  %232 = vst.msk [vmem:[%s3 + $0x18] sm:$0xff] %vm228, %v215
  %233 = vst.msk [vmem:[%s3 + $0x20] sm:$0xff] %vm228, %v216
  %234 = vst.msk [vmem:[%s3 + $0x28] sm:$0xff] %vm228, %v217
  %235 = vst.msk [vmem:[%s3 + $0x30] sm:$0xff] %vm228, %v218
  %236 = vst.msk [vmem:[%s3 + $0x38] sm:$0xff] %vm228, %v219
  %237 = vst.msk [vmem:[%s3 + $0x40] sm:$0xff] %vm228, %v220
  %238 = vst.msk [vmem:[%s3 + $0x48] sm:$0xff] %vm228, %v221
  %239 = vst.msk [vmem:[%s3 + $0x50] sm:$0xff] %vm228, %v222
  %240 = vst.msk [vmem:[%s3 + $0x58] sm:$0xff] %vm228, %v223
  %241 = vst.msk [vmem:[%s3 + $0x60] sm:$0xff] %vm228, %v224
  %242 = vst.msk [vmem:[%s3 + $0x68] sm:$0xff] %vm228, %v225
  %243 = vst.msk [vmem:[%s3 + $0x70] sm:$0xff] %vm228, %v226
  %244 = vst.msk [vmem:[%s3 + $0x78] sm:$0xff] %vm228, %v227
  // Predicated region
  $region14: #{qconvlstm_forward.3} parent=0 // pred_check
    _
  $region15: #{qconvlstm_forward.3} parent=0 // pred_check_branch
    %246 = sbr.rel (0) target = $region17
  $region16: #{qconvlstm_forward.3} parent=0 // pred_region
    _
  $region17: #{qconvlstm_forward.3} parent=0 // pred_fallthru
    _
  // Predicated region
  $region18: #{qconvlstm_forward.3} parent=0 // pred_check
    _
  $region19: #{qconvlstm_forward.3} parent=0 // pred_check_branch
    %248 = sbr.rel (0) target = $region21
  $region20: #{qconvlstm_forward.3} parent=0 // pred_region
    _
  $region21: #{qconvlstm_forward.3} parent=0 // pred_fallthru
    _

// kernel: qconvlstm_forward.4
$region0: #{qconvlstm_forward.4}
  #allocation0 [shape = 'u32[]', space=smem, size = 0x4, offset = 0x4, fixed_abs, tag = 'smem constant byte address 0x4 - core index']
  #allocation1 [shape = 'u32[72,128]{1,0:T(1,128)}', space=vmem, size = 0x9000, scoped, tag = 'internal scratch']
  %s0 = inlined_call_operand.vmem [shape: f32[32,128], index: 0, kind: input, shape index: {}]
  %s1 = inlined_call_operand.vmem [shape: f32[128,16], index: 1, kind: input, shape index: {}]
  %s2 = inlined_call_operand.vmem [shape: f32[1,16], index: 2, kind: input, shape index: {}]
  %s3 = inlined_call_operand.vmem [shape: f32[32,16], index: 3, kind: output, shape index: {}]
  %s4 = sld [smem:[#allocation0]]
  $region22: #{qconvlstm_forward.4} parent=0
    _
  %s6 = ssub.s32 1, %s4
  %s7 = scalar_select 0, %s6, %s4
  // Predicated region
  $region2: #{qconvlstm_forward.4} parent=0 // pred_check
    _
  $region3: #{qconvlstm_forward.4} parent=0 // pred_check_branch
    %9 = sbr.rel (0) target = $region5
  $region4: #{qconvlstm_forward.4} parent=0 // pred_region
    _
  $region5: #{qconvlstm_forward.4} parent=0 // pred_fallthru
    _
  // Predicated region
  $region6: #{qconvlstm_forward.4} parent=0 // pred_check
    _
  $region7: #{qconvlstm_forward.4} parent=0 // pred_check_branch
    %11 = sbr.rel (0) target = $region9
  $region8: #{qconvlstm_forward.4} parent=0 // pred_region
    _
  $region9: #{qconvlstm_forward.4} parent=0 // pred_fallthru
    _
  // Predicated region
  $region10: #{qconvlstm_forward.4} parent=0 // pred_check
    _
  $region11: #{qconvlstm_forward.4} parent=0 // pred_check_branch
    %13 = sbr.rel (0) target = $region13
  $region12: #{qconvlstm_forward.4} parent=0 // pred_region
    _
  $region13: #{qconvlstm_forward.4} parent=0 // pred_fallthru
    _
  %v14 = vld [vmem:[%s0] sm:$0xff]
  %v15 = vld [vmem:[%s0 + $0x8] sm:$0xff]
  %v16 = vld [vmem:[%s0 + $0x10] sm:$0xff]
  %v17 = vld [vmem:[%s0 + $0x18] sm:$0xff]
  %v18 = vld [vmem:[%s1] sm:$0xff]
  %v19 = vld [vmem:[%s1 + $0x8] sm:$0xff]
  %v20 = vld [vmem:[%s1 + $0x10] sm:$0xff]
  %v21 = vld [vmem:[%s1 + $0x18] sm:$0xff]
  %v22 = vld [vmem:[%s1 + $0x20] sm:$0xff]
  %v23 = vld [vmem:[%s1 + $0x28] sm:$0xff]
  %v24 = vld [vmem:[%s1 + $0x30] sm:$0xff]
  %v25 = vld [vmem:[%s1 + $0x38] sm:$0xff]
  %v26 = vld [vmem:[%s1 + $0x40] sm:$0xff]
  %v27 = vld [vmem:[%s1 + $0x48] sm:$0xff]
  %v28 = vld [vmem:[%s1 + $0x50] sm:$0xff]
  %v29 = vld [vmem:[%s1 + $0x58] sm:$0xff]
  %v30 = vld [vmem:[%s1 + $0x60] sm:$0xff]
  %v31 = vld [vmem:[%s1 + $0x68] sm:$0xff]
  %v32 = vld [vmem:[%s1 + $0x70] sm:$0xff]
  %v33 = vld [vmem:[%s1 + $0x78] sm:$0xff]
  %v34 = vld [vmem:[%s2] sm:$0x1]
  %v36 = vperm.slane %v34, 0
  %38 = vmatpush.msra.mxu0 %v33
  %39 = vmatpush.msra.mxu0 %v32
  %40 = vmatpush.msra.mxu0 %v31
  %41 = vmatpush.msra.mxu0 %v30
  %42 = vmatpush.msra.mxu0 %v29
  %43 = vmatpush.msra.mxu0 %v28
  %44 = vmatpush.msra.mxu0 %v27
  %45 = vmatpush.msra.mxu0 %v26
  %46 = vmatpush.msra.mxu0 %v25
  %47 = vmatpush.msra.mxu0 %v24
  %48 = vmatpush.msra.mxu0 %v23
  %49 = vmatpush.msra.mxu0 %v22
  %50 = vmatpush.msra.mxu0 %v21
  %51 = vmatpush.msra.mxu0 %v20
  %52 = vmatpush.msra.mxu0 %v19
  %53 = vmatpush.msra.mxu0 %v18
  %54 = vmatmul.f32.gmra.mxu0 %v14
  %v55 = vpop.f32.mrf.mxu0
  %v56 = vadd.f32 %v36, %v55
  %57 = vmatmul.f32.gmra.mxu0 %v15
  %v58 = vpop.f32.mrf.mxu0
  %v59 = vadd.f32 %v36, %v58
  %60 = vmatmul.f32.gmra.mxu0 %v16
  %v61 = vpop.f32.mrf.mxu0
  %v62 = vadd.f32 %v36, %v61
  %63 = vmatmul.f32.gmra.mxu0 %v17
  %v64 = vpop.f32.mrf.mxu0
  %v65 = vadd.f32 %v36, %v64
  %66 = vdwg.mxu0
  %v67 = vmax.f32 %v56, 0.0
  %v68 = vmax.f32 %v59, 0.0
  %v69 = vmax.f32 %v62, 0.0
  %v70 = vmax.f32 %v65, 0.0
  %vm71 = vcmask 130048
  %72 = vst.msk [vmem:[%s3] sm:$0xff] %vm71, %v67
  %73 = vst.msk [vmem:[%s3 + $0x8] sm:$0xff] %vm71, %v68
  %74 = vst.msk [vmem:[%s3 + $0x10] sm:$0xff] %vm71, %v69
  %75 = vst.msk [vmem:[%s3 + $0x18] sm:$0xff] %vm71, %v70
  // Predicated region
  $region14: #{qconvlstm_forward.4} parent=0 // pred_check
    _
  $region15: #{qconvlstm_forward.4} parent=0 // pred_check_branch
    %77 = sbr.rel (0) target = $region17
  $region16: #{qconvlstm_forward.4} parent=0 // pred_region
    _
  $region17: #{qconvlstm_forward.4} parent=0 // pred_fallthru
    _
  // Predicated region
  $region18: #{qconvlstm_forward.4} parent=0 // pred_check
    _
  $region19: #{qconvlstm_forward.4} parent=0 // pred_check_branch
    %79 = sbr.rel (0) target = $region21
  $region20: #{qconvlstm_forward.4} parent=0 // pred_region
    _
  $region21: #{qconvlstm_forward.4} parent=0 // pred_fallthru
    _

// kernel: qconvlstm_forward.5
$region0: #{qconvlstm_forward.5}
  #allocation0 [shape = 'u32[]', space=smem, size = 0x4, offset = 0x4, fixed_abs, tag = 'smem constant byte address 0x4 - core index']
  #allocation1 [shape = 'u32[72,128]{1,0:T(1,128)}', space=vmem, size = 0x9000, scoped, tag = 'internal scratch']
  #allocation2 [shape = 'f32[8,64]{1,0:T(8,128)}', space=vmem, size = 0x1000, scoped, tag = 'scratch operand']
  #allocation3 [shape = 'f32[1,1]{1,0:T(1,128)S(1)}', space=vmem, size = 0x200, scoped, tag = 'scoped memory for qconvlstm_forward.5']
  %s0 = inlined_call_operand.vmem [shape: f32[8,64], index: 0, kind: input, shape index: {}]
  %s1 = inlined_call_operand.vmem [shape: f32[8,7], index: 1, kind: input, shape index: {}]
  %s2 = inlined_call_operand.vmem [shape: f32[64,128], index: 2, kind: input, shape index: {}]
  %s3 = inlined_call_operand.vmem [shape: f32[1,128], index: 3, kind: input, shape index: {}]
  %s4 = inlined_call_operand.vmem [shape: f32[128,256], index: 4, kind: input, shape index: {}]
  %s5 = inlined_call_operand.vmem [shape: f32[7,256], index: 5, kind: input, shape index: {}]
  %s6 = inlined_call_operand.vmem [shape: f32[1,256], index: 6, kind: input, shape index: {}]
  %s7 = inlined_call_operand.vmem [shape: f32[64,256], index: 7, kind: input, shape index: {}]
  %s8 = inlined_call_operand.vmem [shape: f32[2,64], index: 8, kind: input, shape index: {}]
  %s9 = inlined_call_operand.vmem [shape: f32[2,64], index: 9, kind: input, shape index: {}]
  %s10 = inlined_call_operand.vmem [shape: f32[64,64], index: 10, kind: input, shape index: {}]
  %s11 = inlined_call_operand.vmem [shape: f32[1,64], index: 11, kind: input, shape index: {}]
  %s12 = inlined_call_operand.vmem [shape: f32[64,64], index: 12, kind: input, shape index: {}]
  %s13 = inlined_call_operand.vmem [shape: f32[1,64], index: 13, kind: input, shape index: {}]
  %s14 = inlined_call_operand.vmem [shape: f32[1,64], index: 14, kind: input, shape index: {}]
  %s15 = inlined_call_operand.<no memory space> [shape: f32[1,1], index: 15, kind: input, shape index: {}]
  %s16 = inlined_call_operand.vmem [shape: f32[8,1], index: 16, kind: output, shape index: {0}]
  %s17 = inlined_call_operand.hbm [shape: f32[2,64], index: 17, kind: output, shape index: {1}]
  %s18 = inlined_call_operand.hbm [shape: f32[2,64], index: 18, kind: output, shape index: {2}]
  %19 = xla_tuple %s16, %s17, %s18
  %s20 = sld [smem:[#allocation0]]
  $region90: #{qconvlstm_forward.5} parent=0
    _
  %s22 = ssub.s32 1, %s20
  %s23 = scalar_select 0, %s22, %s20
  %v24 = vstv %s15
  %25 = vst [vmem:[#allocation3] sm:$0x1] %v24
  $region1: #{qconvlstm_forward.5} parent=0
    #allocation4 [shape = 'u8[1024]{0}', space=vmem, size = 0x400, scoped, tag = 'output window, operand 1, single buffered']
    #allocation5 [shape = 's32[1]{0}', space=sflag, size = 0x4, scoped, tag = 'scoped memory for qconvlstm_forward.5']
    #allocation6 [shape = 'u8[1024]{0}', space=vmem, size = 0x400, scoped, tag = 'output window, operand 2, single buffered']
    #allocation7 [shape = 's32[1]{0}', space=sflag, size = 0x4, scoped, tag = 'scoped memory for qconvlstm_forward.5']
    %26 = vsyncpa [#allocation5], 0
    %27 = vsyncpa [#allocation7], 0
    // Predicated region
    $region2: #{qconvlstm_forward.5} parent=1 // pred_check
      _
    $region3: #{qconvlstm_forward.5} parent=1 // pred_check_branch
      %29 = sbr.rel (0) target = $region5
    $region4: #{qconvlstm_forward.5} parent=1 // pred_region
      _
    $region5: #{qconvlstm_forward.5} parent=1 // pred_fallthru
      _
    // Predicated region
    $region6: #{qconvlstm_forward.5} parent=1 // pred_check
      _
    $region7: #{qconvlstm_forward.5} parent=1 // pred_check_branch
      %31 = sbr.rel (0) target = $region9
    $region8: #{qconvlstm_forward.5} parent=1 // pred_region
      _
    $region9: #{qconvlstm_forward.5} parent=1 // pred_fallthru
      _
    // Predicated region
    $region10: #{qconvlstm_forward.5} parent=1 // pred_check
      _
    $region11: #{qconvlstm_forward.5} parent=1 // pred_check_branch
      %33 = sbr.rel (0) target = $region13
    $region12: #{qconvlstm_forward.5} parent=1 // pred_region
      _
    $region13: #{qconvlstm_forward.5} parent=1 // pred_fallthru
      _
    // Predicated region
    $region14: #{qconvlstm_forward.5} parent=1 // pred_check
      _
    $region15: #{qconvlstm_forward.5} parent=1 // pred_check_branch
      %35 = sbr.rel (0) target = $region17
    $region16: #{qconvlstm_forward.5} parent=1 // pred_region
      _
    $region17: #{qconvlstm_forward.5} parent=1 // pred_fallthru
      _
    // Predicated region
    $region18: #{qconvlstm_forward.5} parent=1 // pred_check
      _
    $region19: #{qconvlstm_forward.5} parent=1 // pred_check_branch
      %37 = sbr.rel (0) target = $region21
    $region20: #{qconvlstm_forward.5} parent=1 // pred_region
      _
    $region21: #{qconvlstm_forward.5} parent=1 // pred_fallthru
      _
    // Predicated region
    $region22: #{qconvlstm_forward.5} parent=1 // pred_check
      _
    $region23: #{qconvlstm_forward.5} parent=1 // pred_check_branch
      %39 = sbr.rel (0) target = $region25
    $region24: #{qconvlstm_forward.5} parent=1 // pred_region
      _
    $region25: #{qconvlstm_forward.5} parent=1 // pred_fallthru
      _
    // Predicated region
    $region26: #{qconvlstm_forward.5} parent=1 // pred_check
      _
    $region27: #{qconvlstm_forward.5} parent=1 // pred_check_branch
      %41 = sbr.rel (0) target = $region29
    $region28: #{qconvlstm_forward.5} parent=1 // pred_region
      _
    $region29: #{qconvlstm_forward.5} parent=1 // pred_fallthru
      _
    // Predicated region
    $region30: #{qconvlstm_forward.5} parent=1 // pred_check
      _
    $region31: #{qconvlstm_forward.5} parent=1 // pred_check_branch
      %43 = sbr.rel (0) target = $region33
    $region32: #{qconvlstm_forward.5} parent=1 // pred_region
      _
    $region33: #{qconvlstm_forward.5} parent=1 // pred_fallthru
      _
    // Predicated region
    $region34: #{qconvlstm_forward.5} parent=1 // pred_check
      _
    $region35: #{qconvlstm_forward.5} parent=1 // pred_check_branch
      %45 = sbr.rel (0) target = $region37
    $region36: #{qconvlstm_forward.5} parent=1 // pred_region
      _
    $region37: #{qconvlstm_forward.5} parent=1 // pred_fallthru
      _
    // Predicated region
    $region38: #{qconvlstm_forward.5} parent=1 // pred_check
      _
    $region39: #{qconvlstm_forward.5} parent=1 // pred_check_branch
      %47 = sbr.rel (0) target = $region41
    $region40: #{qconvlstm_forward.5} parent=1 // pred_region
      _
    $region41: #{qconvlstm_forward.5} parent=1 // pred_fallthru
      _
    // Predicated region
    $region42: #{qconvlstm_forward.5} parent=1 // pred_check
      _
    $region43: #{qconvlstm_forward.5} parent=1 // pred_check_branch
      %49 = sbr.rel (0) target = $region45
    $region44: #{qconvlstm_forward.5} parent=1 // pred_region
      _
    $region45: #{qconvlstm_forward.5} parent=1 // pred_fallthru
      _
    // Predicated region
    $region46: #{qconvlstm_forward.5} parent=1 // pred_check
      _
    $region47: #{qconvlstm_forward.5} parent=1 // pred_check_branch
      %51 = sbr.rel (0) target = $region49
    $region48: #{qconvlstm_forward.5} parent=1 // pred_region
      _
    $region49: #{qconvlstm_forward.5} parent=1 // pred_fallthru
      _
    // Predicated region
    $region50: #{qconvlstm_forward.5} parent=1 // pred_check
      _
    $region51: #{qconvlstm_forward.5} parent=1 // pred_check_branch
      %53 = sbr.rel (0) target = $region53
    $region52: #{qconvlstm_forward.5} parent=1 // pred_region
      _
    $region53: #{qconvlstm_forward.5} parent=1 // pred_fallthru
      _
    // Predicated region
    $region54: #{qconvlstm_forward.5} parent=1 // pred_check
      _
    $region55: #{qconvlstm_forward.5} parent=1 // pred_check_branch
      %55 = sbr.rel (0) target = $region57
    $region56: #{qconvlstm_forward.5} parent=1 // pred_region
      _
    $region57: #{qconvlstm_forward.5} parent=1 // pred_fallthru
      _
    // Predicated region
    $region58: #{qconvlstm_forward.5} parent=1 // pred_check
      _
    $region59: #{qconvlstm_forward.5} parent=1 // pred_check_branch
      %57 = sbr.rel (0) target = $region61
    $region60: #{qconvlstm_forward.5} parent=1 // pred_region
      _
    $region61: #{qconvlstm_forward.5} parent=1 // pred_fallthru
      _
    // Predicated region
    $region62: #{qconvlstm_forward.5} parent=1 // pred_check
      _
    $region63: #{qconvlstm_forward.5} parent=1 // pred_check_branch
      %59 = sbr.rel (0) target = $region65
    $region64: #{qconvlstm_forward.5} parent=1 // pred_region
      _
    $region65: #{qconvlstm_forward.5} parent=1 // pred_fallthru
      _
    %v60 = vld [vmem:[%s0] sm:$0xff]
    %v61 = vld [vmem:[%s2] sm:$0xff]
    %v62 = vld [vmem:[%s2 + $0x8] sm:$0xff]
    %v63 = vld [vmem:[%s2 + $0x10] sm:$0xff]
    %v64 = vld [vmem:[%s2 + $0x18] sm:$0xff]
    %v65 = vld [vmem:[%s2 + $0x20] sm:$0xff]
    %v66 = vld [vmem:[%s2 + $0x28] sm:$0xff]
    %v67 = vld [vmem:[%s2 + $0x30] sm:$0xff]
    %v68 = vld [vmem:[%s2 + $0x38] sm:$0xff]
    %v69 = vld [vmem:[%s3] sm:$0x1]
    %v71 = vperm.slane %v69, 0
    %vm73 = vcmask 523264
    %v75 = vsel %vm73, %v60, 0
    %77 = vmatpush.msra.mxu0 0.0
    %78 = vmatpush.msra.mxu0 0.0
    %79 = vmatpush.msra.mxu0 0.0
    %80 = vmatpush.msra.mxu0 0.0
    %81 = vmatpush.msra.mxu0 0.0
    %82 = vmatpush.msra.mxu0 0.0
    %83 = vmatpush.msra.mxu0 0.0
    %84 = vmatpush.msra.mxu0 0.0
    %85 = vmatpush.msra.mxu0 %v68
    %86 = vmatpush.msra.mxu0 %v67
    %87 = vmatpush.msra.mxu0 %v66
    %88 = vmatpush.msra.mxu0 %v65
    %89 = vmatpush.msra.mxu0 %v64
    %90 = vmatpush.msra.mxu0 %v63
    %91 = vmatpush.msra.mxu0 %v62
    %92 = vmatpush.msra.mxu0 %v61
    %93 = vmatmul.f32.gmra.mxu0 %v75
    %v94 = vpop.f32.mrf.mxu0
    %v95 = vadd.f32 %v71, %v94
    %96 = vdwg.mxu0
    %v97 = vmax.f32 %v95, 0.0
    %v98 = vld [vmem:[%s4] sm:$0xff]
    %v99 = vld [vmem:[%s4 + $0x8] sm:$0xff]
    %v100 = vld [vmem:[%s4 + $0x10] sm:$0xff]
    %v101 = vld [vmem:[%s4 + $0x18] sm:$0xff]
    %v102 = vld [vmem:[%s4 + $0x20] sm:$0xff]
    %v103 = vld [vmem:[%s4 + $0x28] sm:$0xff]
    %v104 = vld [vmem:[%s4 + $0x30] sm:$0xff]
    %v105 = vld [vmem:[%s4 + $0x38] sm:$0xff]
    %v106 = vld [vmem:[%s4 + $0x40] sm:$0xff]
    %v107 = vld [vmem:[%s4 + $0x48] sm:$0xff]
    %v108 = vld [vmem:[%s4 + $0x50] sm:$0xff]
    %v109 = vld [vmem:[%s4 + $0x58] sm:$0xff]
    %v110 = vld [vmem:[%s4 + $0x60] sm:$0xff]
    %v111 = vld [vmem:[%s4 + $0x68] sm:$0xff]
    %v112 = vld [vmem:[%s4 + $0x70] sm:$0xff]
    %v113 = vld [vmem:[%s4 + $0x78] sm:$0xff]
    %v114 = vld [vmem:[%s4 + $0x80] sm:$0xff]
    %v115 = vld [vmem:[%s4 + $0x88] sm:$0xff]
    %v116 = vld [vmem:[%s4 + $0x90] sm:$0xff]
    %v117 = vld [vmem:[%s4 + $0x98] sm:$0xff]
    %v118 = vld [vmem:[%s4 + $0xa0] sm:$0xff]
    %v119 = vld [vmem:[%s4 + $0xa8] sm:$0xff]
    %v120 = vld [vmem:[%s4 + $0xb0] sm:$0xff]
    %v121 = vld [vmem:[%s4 + $0xb8] sm:$0xff]
    %v122 = vld [vmem:[%s4 + $0xc0] sm:$0xff]
    %v123 = vld [vmem:[%s4 + $0xc8] sm:$0xff]
    %v124 = vld [vmem:[%s4 + $0xd0] sm:$0xff]
    %v125 = vld [vmem:[%s4 + $0xd8] sm:$0xff]
    %v126 = vld [vmem:[%s4 + $0xe0] sm:$0xff]
    %v127 = vld [vmem:[%s4 + $0xe8] sm:$0xff]
    %v128 = vld [vmem:[%s4 + $0xf0] sm:$0xff]
    %v129 = vld [vmem:[%s4 + $0xf8] sm:$0xff]
    %v130 = vld [vmem:[%s1] sm:$0xff]
    %v131 = vld [vmem:[%s5] sm:$0x7f]
    %v132 = vld [vmem:[%s5 + $0x8] sm:$0x7f]
    %vm133 = vcmask 56320
    %v135 = vsel %vm133, %v130, 0
    %vm137 = vcmask 1046528
    %v139 = vsel %vm137, %v131, 0
    %v142 = vsel %vm137, %v132, 0
    %144 = vmatpush.msra.mxu0 0.0
    %145 = vmatpush.msra.mxu0 0.0
    %146 = vmatpush.msra.mxu0 0.0
    %147 = vmatpush.msra.mxu0 0.0
    %148 = vmatpush.msra.mxu0 0.0
    %149 = vmatpush.msra.mxu0 0.0
    %150 = vmatpush.msra.mxu0 0.0
    %151 = vmatpush.msra.mxu0 0.0
    %152 = vmatpush.msra.mxu0 0.0
    %153 = vmatpush.msra.mxu0 0.0
    %154 = vmatpush.msra.mxu0 0.0
    %155 = vmatpush.msra.mxu0 0.0
    %156 = vmatpush.msra.mxu0 0.0
    %157 = vmatpush.msra.mxu0 0.0
    %158 = vmatpush.msra.mxu0 0.0
    %159 = vmatpush.msra.mxu0 %v139
    %160 = vmatmul.f32.gmra.mxu0 %v135
    %v161 = vpop.f32.mrf.mxu0
    %v162 = vadd.f32 0.0, %v161
    %163 = vdwg.mxu0
    %164 = vmatpush.msra.mxu0 0.0
    %165 = vmatpush.msra.mxu0 0.0
    %166 = vmatpush.msra.mxu0 0.0
    %167 = vmatpush.msra.mxu0 0.0
    %168 = vmatpush.msra.mxu0 0.0
    %169 = vmatpush.msra.mxu0 0.0
    %170 = vmatpush.msra.mxu0 0.0
    %171 = vmatpush.msra.mxu0 0.0
    %172 = vmatpush.msra.mxu0 0.0
    %173 = vmatpush.msra.mxu0 0.0
    %174 = vmatpush.msra.mxu0 0.0
    %175 = vmatpush.msra.mxu0 0.0
    %176 = vmatpush.msra.mxu0 0.0
    %177 = vmatpush.msra.mxu0 0.0
    %178 = vmatpush.msra.mxu0 0.0
    %179 = vmatpush.msra.mxu0 %v142
    %180 = vmatmul.f32.gmra.mxu0 %v135
    %v181 = vpop.f32.mrf.mxu0
    %v182 = vadd.f32 0.0, %v181
    %183 = vdwg.mxu0
    %184 = vmatpush.msra.mxu0 %v128
    %185 = vmatpush.msra.mxu0 %v126
    %186 = vmatpush.msra.mxu0 %v124
    %187 = vmatpush.msra.mxu0 %v122
    %188 = vmatpush.msra.mxu0 %v120
    %189 = vmatpush.msra.mxu0 %v118
    %190 = vmatpush.msra.mxu0 %v116
    %191 = vmatpush.msra.mxu0 %v114
    %192 = vmatpush.msra.mxu0 %v112
    %193 = vmatpush.msra.mxu0 %v110
    %194 = vmatpush.msra.mxu0 %v108
    %195 = vmatpush.msra.mxu0 %v106
    %196 = vmatpush.msra.mxu0 %v104
    %197 = vmatpush.msra.mxu0 %v102
    %198 = vmatpush.msra.mxu0 %v100
    %199 = vmatpush.msra.mxu0 %v98
    %200 = vmatmul.f32.gmra.mxu0 %v97
    %v201 = vpop.f32.mrf.mxu0
    %v202 = vadd.f32 %v162, %v201
    %203 = vdwg.mxu0
    %204 = vmatpush.msra.mxu0 %v129
    %205 = vmatpush.msra.mxu0 %v127
    %206 = vmatpush.msra.mxu0 %v125
    %207 = vmatpush.msra.mxu0 %v123
    %208 = vmatpush.msra.mxu0 %v121
    %209 = vmatpush.msra.mxu0 %v119
    %210 = vmatpush.msra.mxu0 %v117
    %211 = vmatpush.msra.mxu0 %v115
    %212 = vmatpush.msra.mxu0 %v113
    %213 = vmatpush.msra.mxu0 %v111
    %214 = vmatpush.msra.mxu0 %v109
    %215 = vmatpush.msra.mxu0 %v107
    %216 = vmatpush.msra.mxu0 %v105
    %217 = vmatpush.msra.mxu0 %v103
    %218 = vmatpush.msra.mxu0 %v101
    %219 = vmatpush.msra.mxu0 %v99
    %220 = vmatmul.f32.gmra.mxu0 %v97
    %v221 = vpop.f32.mrf.mxu0
    %v222 = vadd.f32 %v182, %v221
    %223 = vdwg.mxu0
    %v224 = vld [vmem:[%s6] sm:$0x3]
    %v226 = vperm.slane %v224, 0
    %v227 = vperm.slane %v224, 1
    %v230 = vadd.f32 %v202, %v226
    %v231 = vadd.f32 %v222, %v227
    %v232 = vld [vmem:[%s7] sm:$0xff]
    %v233 = vld [vmem:[%s7 + $0x8] sm:$0xff]
    %v234 = vld [vmem:[%s7 + $0x10] sm:$0xff]
    %v235 = vld [vmem:[%s7 + $0x18] sm:$0xff]
    %v236 = vld [vmem:[%s7 + $0x20] sm:$0xff]
    %v237 = vld [vmem:[%s7 + $0x28] sm:$0xff]
    %v238 = vld [vmem:[%s7 + $0x30] sm:$0xff]
    %v239 = vld [vmem:[%s7 + $0x38] sm:$0xff]
    %v240 = vld [vmem:[%s7 + $0x40] sm:$0xff]
    %v241 = vld [vmem:[%s7 + $0x48] sm:$0xff]
    %v242 = vld [vmem:[%s7 + $0x50] sm:$0xff]
    %v243 = vld [vmem:[%s7 + $0x58] sm:$0xff]
    %v244 = vld [vmem:[%s7 + $0x60] sm:$0xff]
    %v245 = vld [vmem:[%s7 + $0x68] sm:$0xff]
    %v246 = vld [vmem:[%s7 + $0x70] sm:$0xff]
    %v247 = vld [vmem:[%s7 + $0x78] sm:$0xff]
    %v248 = vld [vmem:[%s8] sm:$0x3]
    %v249 = vld [vmem:[%s9] sm:$0x3]
    %v251 = vsel %vm73, %v248, 0
    %253 = vmatpush.msra.mxu0 0.0
    %254 = vmatpush.msra.mxu0 0.0
    %255 = vmatpush.msra.mxu0 0.0
    %256 = vmatpush.msra.mxu0 0.0
    %257 = vmatpush.msra.mxu0 0.0
    %258 = vmatpush.msra.mxu0 0.0
    %259 = vmatpush.msra.mxu0 0.0
    %260 = vmatpush.msra.mxu0 0.0
    %261 = vmatpush.msra.mxu0 %v246
    %262 = vmatpush.msra.mxu0 %v244
    %263 = vmatpush.msra.mxu0 %v242
    %264 = vmatpush.msra.mxu0 %v240
    %265 = vmatpush.msra.mxu0 %v238
    %266 = vmatpush.msra.mxu0 %v236
    %267 = vmatpush.msra.mxu0 %v234
    %268 = vmatpush.msra.mxu0 %v232
    %269 = vmatmul.f32.gmra.mxu0 %v251
    %v270 = vpop.f32.mrf.mxu0
    %v271 = vadd.f32 0.0, %v270
    %272 = vdwg.mxu0
    %273 = vmatpush.msra.mxu0 0.0
    %274 = vmatpush.msra.mxu0 0.0
    %275 = vmatpush.msra.mxu0 0.0
    %276 = vmatpush.msra.mxu0 0.0
    %277 = vmatpush.msra.mxu0 0.0
    %278 = vmatpush.msra.mxu0 0.0
    %279 = vmatpush.msra.mxu0 0.0
    %280 = vmatpush.msra.mxu0 0.0
    %281 = vmatpush.msra.mxu0 %v247
    %282 = vmatpush.msra.mxu0 %v245
    %283 = vmatpush.msra.mxu0 %v243
    %284 = vmatpush.msra.mxu0 %v241
    %285 = vmatpush.msra.mxu0 %v239
    %286 = vmatpush.msra.mxu0 %v237
    %287 = vmatpush.msra.mxu0 %v235
    %288 = vmatpush.msra.mxu0 %v233
    %289 = vmatmul.f32.gmra.mxu0 %v251
    %v290 = vpop.f32.mrf.mxu0
    %v291 = vadd.f32 0.0, %v290
    %292 = vdwg.mxu0
    %v293 = vadd.f32 %v230, %v271
    %v294 = vadd.f32 %v231, %v291
    %v295 = vxor.u32 %v293, 2147483648
    %v296 = vmul.f32 %v295, 1.442695
    %v297 = vpow.pop %v296
    %v298 = vadd.f32 %v297, 1.0
    %v299 = vrcp.pop %v298
    %v300 = vmul.f32 %v298, %v299
    %v301 = vsub.f32 1.0, %v300
    %v302 = vmul.f32 %v299, %v301
    %v303 = vadd.f32 %v299, %v302
    %vm304 = vweird.f32 %v298
    %vm305 = vweird.f32 %v299
    %vm306 = vmor %vm304, %vm305
    %v307 = vsel %vm306, %v299, %v303
    %v308 = vand.u32 2147483647, %v298
    %vm309 = vcmp.eq.f32.partialorder %v308, 8.507059e+37
    %v310 = vand.u32 %v298, 2147483648
    %v311 = vor.u32 1.1754944e-38, %v310
    %v312 = vsel %vm309, %v311, %v307
    %v313 = vmul.f32 1.0, %v312
    %v314 = vtanh.pop %v294
    %v315 = vxor.u32 %v294, 2147483648
    %v316 = vmul.f32 %v315, 1.442695
    %v317 = vpow.pop %v316
    %v318 = vadd.f32 %v317, 1.0
    %v319 = vrcp.pop %v318
    %v320 = vmul.f32 %v318, %v319
    %v321 = vsub.f32 1.0, %v320
    %v322 = vmul.f32 %v319, %v321
    %v323 = vadd.f32 %v319, %v322
    %vm324 = vweird.f32 %v318
    %vm325 = vweird.f32 %v319
    %vm326 = vmor %vm324, %vm325
    %v327 = vsel %vm326, %v319, %v323
    %v328 = vand.u32 2147483647, %v318
    %vm329 = vcmp.eq.f32.partialorder %v328, 8.507059e+37
    %v330 = vand.u32 %v318, 2147483648
    %v331 = vor.u32 1.1754944e-38, %v330
    %v332 = vsel %vm329, %v331, %v327
    %v333 = vmul.f32 1.0, %v332
    %335 = vrot.lane.b32.xlu0 %v249, 64
    %v336 = vpop.permute.xlu0 %335
    %v338 = vmul.f32 %v313, %v336
    %v339 = vmul.f32 %v313, %v314
    %341 = vrot.lane.b32.xlu0 %v339, 64
    %v342 = vpop.permute.xlu0 %341
    %v344 = vadd.f32 %v338, %v342
    %v345 = vtanh.pop %v344
    %v346 = vmul.f32 %v333, %v345
    %348 = vrot.lane.b32.xlu0 %v346, 64
    %v349 = vpop.permute.xlu0 %348
    %vm351 = vcmask 517120
    %352 = vst.msk [vmem:[#allocation2] sm:$0x3] %vm351, %v349
    %v353 = vsel %vm73, %v349, 0
    %355 = vmatpush.msra.mxu0 0.0
    %356 = vmatpush.msra.mxu0 0.0
    %357 = vmatpush.msra.mxu0 0.0
    %358 = vmatpush.msra.mxu0 0.0
    %359 = vmatpush.msra.mxu0 0.0
    %360 = vmatpush.msra.mxu0 0.0
    %361 = vmatpush.msra.mxu0 0.0
    %362 = vmatpush.msra.mxu0 0.0
    %363 = vmatpush.msra.mxu0 %v246
    %364 = vmatpush.msra.mxu0 %v244
    %365 = vmatpush.msra.mxu0 %v242
    %366 = vmatpush.msra.mxu0 %v240
    %367 = vmatpush.msra.mxu0 %v238
    %368 = vmatpush.msra.mxu0 %v236
    %369 = vmatpush.msra.mxu0 %v234
    %370 = vmatpush.msra.mxu0 %v232
    %371 = vmatmul.f32.gmra.mxu0 %v353
    %v372 = vpop.f32.mrf.mxu0
    %v373 = vadd.f32 0.0, %v372
    %374 = vdwg.mxu0
    %375 = vmatpush.msra.mxu0 0.0
    %376 = vmatpush.msra.mxu0 0.0
    %377 = vmatpush.msra.mxu0 0.0
    %378 = vmatpush.msra.mxu0 0.0
    %379 = vmatpush.msra.mxu0 0.0
    %380 = vmatpush.msra.mxu0 0.0
    %381 = vmatpush.msra.mxu0 0.0
    %382 = vmatpush.msra.mxu0 0.0
    %383 = vmatpush.msra.mxu0 %v247
    %384 = vmatpush.msra.mxu0 %v245
    %385 = vmatpush.msra.mxu0 %v243
    %386 = vmatpush.msra.mxu0 %v241
    %387 = vmatpush.msra.mxu0 %v239
    %388 = vmatpush.msra.mxu0 %v237
    %389 = vmatpush.msra.mxu0 %v235
    %390 = vmatpush.msra.mxu0 %v233
    %391 = vmatmul.f32.gmra.mxu0 %v353
    %v392 = vpop.f32.mrf.mxu0
    %v393 = vadd.f32 0.0, %v392
    %394 = vdwg.mxu0
    %v397 = vrot.slane %v373, 6
    %v398 = vrot.slane %v393, 6
    %v401 = vadd.f32 %v230, %v397
    %v402 = vadd.f32 %v231, %v398
    %v403 = vxor.u32 %v401, 2147483648
    %v404 = vmul.f32 %v403, 1.442695
    %v405 = vpow.pop %v404
    %v406 = vadd.f32 %v405, 1.0
    %v407 = vrcp.pop %v406
    %v408 = vmul.f32 %v406, %v407
    %v409 = vsub.f32 1.0, %v408
    %v410 = vmul.f32 %v407, %v409
    %v411 = vadd.f32 %v407, %v410
    %vm412 = vweird.f32 %v406
    %vm413 = vweird.f32 %v407
    %vm414 = vmor %vm412, %vm413
    %v415 = vsel %vm414, %v407, %v411
    %v416 = vand.u32 2147483647, %v406
    %vm417 = vcmp.eq.f32.partialorder %v416, 8.507059e+37
    %v418 = vand.u32 %v406, 2147483648
    %v419 = vor.u32 1.1754944e-38, %v418
    %v420 = vsel %vm417, %v419, %v415
    %v421 = vmul.f32 1.0, %v420
    %v422 = vtanh.pop %v402
    %v423 = vxor.u32 %v402, 2147483648
    %v424 = vmul.f32 %v423, 1.442695
    %v425 = vpow.pop %v424
    %v426 = vadd.f32 %v425, 1.0
    %v427 = vrcp.pop %v426
    %v428 = vmul.f32 %v426, %v427
    %v429 = vsub.f32 1.0, %v428
    %v430 = vmul.f32 %v427, %v429
    %v431 = vadd.f32 %v427, %v430
    %vm432 = vweird.f32 %v426
    %vm433 = vweird.f32 %v427
    %vm434 = vmor %vm432, %vm433
    %v435 = vsel %vm434, %v427, %v431
    %v436 = vand.u32 2147483647, %v426
    %vm437 = vcmp.eq.f32.partialorder %v436, 8.507059e+37
    %v438 = vand.u32 %v426, 2147483648
    %v439 = vor.u32 1.1754944e-38, %v438
    %v440 = vsel %vm437, %v439, %v435
    %v441 = vmul.f32 1.0, %v440
    %v443 = vrot.slane %v344, 6
    %v445 = vmul.f32 %v421, %v443
    %v446 = vmul.f32 %v421, %v422
    %448 = vrot.lane.b32.xlu0 %v446, 64
    %v449 = vpop.permute.xlu0 %448
    %v451 = vadd.f32 %v445, %v449
    %v452 = vtanh.pop %v451
    %v453 = vmul.f32 %v441, %v452
    %455 = vrot.lane.b32.xlu0 %v453, 64
    %v456 = vpop.permute.xlu0 %455
    %vm458 = vcmask 519170
    %459 = vst.msk [vmem:[#allocation2] sm:$0xc] %vm458, %v456
    %v460 = vrot.slane %v453, 2
    %461 = vrot.lane.b32.xlu0 %v460, 64
    %v462 = vpop.permute.xlu0 %461
    %v463 = vsel %vm73, %v462, 0
    %465 = vmatpush.msra.mxu0 0.0
    %466 = vmatpush.msra.mxu0 0.0
    %467 = vmatpush.msra.mxu0 0.0
    %468 = vmatpush.msra.mxu0 0.0
    %469 = vmatpush.msra.mxu0 0.0
    %470 = vmatpush.msra.mxu0 0.0
    %471 = vmatpush.msra.mxu0 0.0
    %472 = vmatpush.msra.mxu0 0.0
    %473 = vmatpush.msra.mxu0 %v246
    %474 = vmatpush.msra.mxu0 %v244
    %475 = vmatpush.msra.mxu0 %v242
    %476 = vmatpush.msra.mxu0 %v240
    %477 = vmatpush.msra.mxu0 %v238
    %478 = vmatpush.msra.mxu0 %v236
    %479 = vmatpush.msra.mxu0 %v234
    %480 = vmatpush.msra.mxu0 %v232
    %481 = vmatmul.f32.gmra.mxu0 %v463
    %v482 = vpop.f32.mrf.mxu0
    %v483 = vadd.f32 0.0, %v482
    %484 = vdwg.mxu0
    %485 = vmatpush.msra.mxu0 0.0
    %486 = vmatpush.msra.mxu0 0.0
    %487 = vmatpush.msra.mxu0 0.0
    %488 = vmatpush.msra.mxu0 0.0
    %489 = vmatpush.msra.mxu0 0.0
    %490 = vmatpush.msra.mxu0 0.0
    %491 = vmatpush.msra.mxu0 0.0
    %492 = vmatpush.msra.mxu0 0.0
    %493 = vmatpush.msra.mxu0 %v247
    %494 = vmatpush.msra.mxu0 %v245
    %495 = vmatpush.msra.mxu0 %v243
    %496 = vmatpush.msra.mxu0 %v241
    %497 = vmatpush.msra.mxu0 %v239
    %498 = vmatpush.msra.mxu0 %v237
    %499 = vmatpush.msra.mxu0 %v235
    %500 = vmatpush.msra.mxu0 %v233
    %501 = vmatmul.f32.gmra.mxu0 %v463
    %v502 = vpop.f32.mrf.mxu0
    %v503 = vadd.f32 0.0, %v502
    %504 = vdwg.mxu0
    %v507 = vrot.slane %v483, 4
    %v508 = vrot.slane %v503, 4
    %v511 = vadd.f32 %v230, %v507
    %v512 = vadd.f32 %v231, %v508
    %v513 = vxor.u32 %v511, 2147483648
    %v514 = vmul.f32 %v513, 1.442695
    %v515 = vpow.pop %v514
    %v516 = vadd.f32 %v515, 1.0
    %v517 = vrcp.pop %v516
    %v518 = vmul.f32 %v516, %v517
    %v519 = vsub.f32 1.0, %v518
    %v520 = vmul.f32 %v517, %v519
    %v521 = vadd.f32 %v517, %v520
    %vm522 = vweird.f32 %v516
    %vm523 = vweird.f32 %v517
    %vm524 = vmor %vm522, %vm523
    %v525 = vsel %vm524, %v517, %v521
    %v526 = vand.u32 2147483647, %v516
    %vm527 = vcmp.eq.f32.partialorder %v526, 8.507059e+37
    %v528 = vand.u32 %v516, 2147483648
    %v529 = vor.u32 1.1754944e-38, %v528
    %v530 = vsel %vm527, %v529, %v525
    %v531 = vmul.f32 1.0, %v530
    %v532 = vtanh.pop %v512
    %v533 = vxor.u32 %v512, 2147483648
    %v534 = vmul.f32 %v533, 1.442695
    %v535 = vpow.pop %v534
    %v536 = vadd.f32 %v535, 1.0
    %v537 = vrcp.pop %v536
    %v538 = vmul.f32 %v536, %v537
    %v539 = vsub.f32 1.0, %v538
    %v540 = vmul.f32 %v537, %v539
    %v541 = vadd.f32 %v537, %v540
    %vm542 = vweird.f32 %v536
    %vm543 = vweird.f32 %v537
    %vm544 = vmor %vm542, %vm543
    %v545 = vsel %vm544, %v537, %v541
    %v546 = vand.u32 2147483647, %v536
    %vm547 = vcmp.eq.f32.partialorder %v546, 8.507059e+37
    %v548 = vand.u32 %v536, 2147483648
    %v549 = vor.u32 1.1754944e-38, %v548
    %v550 = vsel %vm547, %v549, %v545
    %v551 = vmul.f32 1.0, %v550
    %v553 = vrot.slane %v451, 6
    %v555 = vmul.f32 %v531, %v553
    %v556 = vmul.f32 %v531, %v532
    %558 = vrot.lane.b32.xlu0 %v556, 64
    %v559 = vpop.permute.xlu0 %558
    %v561 = vadd.f32 %v555, %v559
    %v562 = vtanh.pop %v561
    %v563 = vmul.f32 %v551, %v562
    %565 = vrot.lane.b32.xlu0 %v563, 64
    %v566 = vpop.permute.xlu0 %565
    %vm568 = vcmask 521220
    %569 = vst.msk [vmem:[#allocation2] sm:$0x30] %vm568, %v566
    %v570 = vrot.slane %v563, 4
    %571 = vrot.lane.b32.xlu0 %v570, 64
    %v572 = vpop.permute.xlu0 %571
    %v573 = vsel %vm73, %v572, 0
    %575 = vmatpush.msra.mxu0 0.0
    %576 = vmatpush.msra.mxu0 0.0
    %577 = vmatpush.msra.mxu0 0.0
    %578 = vmatpush.msra.mxu0 0.0
    %579 = vmatpush.msra.mxu0 0.0
    %580 = vmatpush.msra.mxu0 0.0
    %581 = vmatpush.msra.mxu0 0.0
    %582 = vmatpush.msra.mxu0 0.0
    %583 = vmatpush.msra.mxu0 %v246
    %584 = vmatpush.msra.mxu0 %v244
    %585 = vmatpush.msra.mxu0 %v242
    %586 = vmatpush.msra.mxu0 %v240
    %587 = vmatpush.msra.mxu0 %v238
    %588 = vmatpush.msra.mxu0 %v236
    %589 = vmatpush.msra.mxu0 %v234
    %590 = vmatpush.msra.mxu0 %v232
    %591 = vmatmul.f32.gmra.mxu0 %v573
    %v592 = vpop.f32.mrf.mxu0
    %v593 = vadd.f32 0.0, %v592
    %594 = vdwg.mxu0
    %595 = vmatpush.msra.mxu0 0.0
    %596 = vmatpush.msra.mxu0 0.0
    %597 = vmatpush.msra.mxu0 0.0
    %598 = vmatpush.msra.mxu0 0.0
    %599 = vmatpush.msra.mxu0 0.0
    %600 = vmatpush.msra.mxu0 0.0
    %601 = vmatpush.msra.mxu0 0.0
    %602 = vmatpush.msra.mxu0 0.0
    %603 = vmatpush.msra.mxu0 %v247
    %604 = vmatpush.msra.mxu0 %v245
    %605 = vmatpush.msra.mxu0 %v243
    %606 = vmatpush.msra.mxu0 %v241
    %607 = vmatpush.msra.mxu0 %v239
    %608 = vmatpush.msra.mxu0 %v237
    %609 = vmatpush.msra.mxu0 %v235
    %610 = vmatpush.msra.mxu0 %v233
    %611 = vmatmul.f32.gmra.mxu0 %v573
    %v612 = vpop.f32.mrf.mxu0
    %v613 = vadd.f32 0.0, %v612
    %614 = vdwg.mxu0
    %v617 = vrot.slane %v593, 2
    %v618 = vrot.slane %v613, 2
    %v621 = vadd.f32 %v230, %v617
    %v622 = vadd.f32 %v231, %v618
    %v623 = vxor.u32 %v621, 2147483648
    %v624 = vmul.f32 %v623, 1.442695
    %v625 = vpow.pop %v624
    %v626 = vadd.f32 %v625, 1.0
    %v627 = vrcp.pop %v626
    %v628 = vmul.f32 %v626, %v627
    %v629 = vsub.f32 1.0, %v628
    %v630 = vmul.f32 %v627, %v629
    %v631 = vadd.f32 %v627, %v630
    %vm632 = vweird.f32 %v626
    %vm633 = vweird.f32 %v627
    %vm634 = vmor %vm632, %vm633
    %v635 = vsel %vm634, %v627, %v631
    %v636 = vand.u32 2147483647, %v626
    %vm637 = vcmp.eq.f32.partialorder %v636, 8.507059e+37
    %v638 = vand.u32 %v626, 2147483648
    %v639 = vor.u32 1.1754944e-38, %v638
    %v640 = vsel %vm637, %v639, %v635
    %v641 = vmul.f32 1.0, %v640
    %v642 = vtanh.pop %v622
    %v643 = vxor.u32 %v622, 2147483648
    %v644 = vmul.f32 %v643, 1.442695
    %v645 = vpow.pop %v644
    %v646 = vadd.f32 %v645, 1.0
    %v647 = vrcp.pop %v646
    %v648 = vmul.f32 %v646, %v647
    %v649 = vsub.f32 1.0, %v648
    %v650 = vmul.f32 %v647, %v649
    %v651 = vadd.f32 %v647, %v650
    %vm652 = vweird.f32 %v646
    %vm653 = vweird.f32 %v647
    %vm654 = vmor %vm652, %vm653
    %v655 = vsel %vm654, %v647, %v651
    %v656 = vand.u32 2147483647, %v646
    %vm657 = vcmp.eq.f32.partialorder %v656, 8.507059e+37
    %v658 = vand.u32 %v646, 2147483648
    %v659 = vor.u32 1.1754944e-38, %v658
    %v660 = vsel %vm657, %v659, %v655
    %v661 = vmul.f32 1.0, %v660
    %v663 = vrot.slane %v561, 6
    %v665 = vmul.f32 %v641, %v663
    %v666 = vmul.f32 %v641, %v642
    %668 = vrot.lane.b32.xlu0 %v666, 64
    %v669 = vpop.permute.xlu0 %668
    %v671 = vadd.f32 %v665, %v669
    %v672 = vtanh.pop %v671
    %v673 = vmul.f32 %v661, %v672
    %675 = vrot.lane.b32.xlu0 %v673, 64
    %v676 = vpop.permute.xlu0 %675
    %vm678 = vcmask 523270
    %679 = vst.msk [vmem:[#allocation2] sm:$0xc0] %vm678, %v676
    %680 = vst.msk [vmem:[#allocation4 - $0x6] sm:$0xc0] %vm678, %v676
    %682 = vrot.lane.b32.xlu0 %v671, 64
    %v683 = vpop.permute.xlu0 %682
    %685 = vst.msk [vmem:[#allocation6 - $0x6] sm:$0xc0] %vm678, %v683
    %v686 = vld [vmem:[#allocation2] sm:$0xff]
    %v687 = vld [vmem:[%s10] sm:$0xff]
    %v688 = vld [vmem:[%s10 + $0x8] sm:$0xff]
    %v689 = vld [vmem:[%s10 + $0x10] sm:$0xff]
    %v690 = vld [vmem:[%s10 + $0x18] sm:$0xff]
    %v691 = vld [vmem:[%s10 + $0x20] sm:$0xff]
    %v692 = vld [vmem:[%s10 + $0x28] sm:$0xff]
    %v693 = vld [vmem:[%s10 + $0x30] sm:$0xff]
    %v694 = vld [vmem:[%s10 + $0x38] sm:$0xff]
    %v695 = vld [vmem:[%s11] sm:$0x1]
    %v697 = vperm.slane %v695, 0
    %v700 = vsel %vm73, %v686, 0
    %702 = vmatpush.msra.mxu0 0.0
    %703 = vmatpush.msra.mxu0 0.0
    %704 = vmatpush.msra.mxu0 0.0
    %705 = vmatpush.msra.mxu0 0.0
    %706 = vmatpush.msra.mxu0 0.0
    %707 = vmatpush.msra.mxu0 0.0
    %708 = vmatpush.msra.mxu0 0.0
    %709 = vmatpush.msra.mxu0 0.0
    %710 = vmatpush.msra.mxu0 %v694
    %711 = vmatpush.msra.mxu0 %v693
    %712 = vmatpush.msra.mxu0 %v692
    %713 = vmatpush.msra.mxu0 %v691
    %714 = vmatpush.msra.mxu0 %v690
    %715 = vmatpush.msra.mxu0 %v689
    %716 = vmatpush.msra.mxu0 %v688
    %717 = vmatpush.msra.mxu0 %v687
    %718 = vmatmul.f32.gmra.mxu0 %v700
    %v719 = vpop.f32.mrf.mxu0
    %v720 = vadd.f32 %v697, %v719
    %721 = vdwg.mxu0
    %v722 = vmax.f32 %v720, 0.0
    %v723 = vld [vmem:[%s12] sm:$0xff]
    %v724 = vld [vmem:[%s12 + $0x8] sm:$0xff]
    %v725 = vld [vmem:[%s12 + $0x10] sm:$0xff]
    %v726 = vld [vmem:[%s12 + $0x18] sm:$0xff]
    %v727 = vld [vmem:[%s12 + $0x20] sm:$0xff]
    %v728 = vld [vmem:[%s12 + $0x28] sm:$0xff]
    %v729 = vld [vmem:[%s12 + $0x30] sm:$0xff]
    %v730 = vld [vmem:[%s12 + $0x38] sm:$0xff]
    %v731 = vld [vmem:[%s13] sm:$0x1]
    %v733 = vperm.slane %v731, 0
    %v736 = vsel %vm73, %v722, 0
    %738 = vmatpush.msra.mxu0 0.0
    %739 = vmatpush.msra.mxu0 0.0
    %740 = vmatpush.msra.mxu0 0.0
    %741 = vmatpush.msra.mxu0 0.0
    %742 = vmatpush.msra.mxu0 0.0
    %743 = vmatpush.msra.mxu0 0.0
    %744 = vmatpush.msra.mxu0 0.0
    %745 = vmatpush.msra.mxu0 0.0
    %746 = vmatpush.msra.mxu0 %v730
    %747 = vmatpush.msra.mxu0 %v729
    %748 = vmatpush.msra.mxu0 %v728
    %749 = vmatpush.msra.mxu0 %v727
    %750 = vmatpush.msra.mxu0 %v726
    %751 = vmatpush.msra.mxu0 %v725
    %752 = vmatpush.msra.mxu0 %v724
    %753 = vmatpush.msra.mxu0 %v723
    %754 = vmatmul.f32.gmra.mxu0 %v736
    %v755 = vpop.f32.mrf.mxu0
    %v756 = vadd.f32 %v733, %v755
    %757 = vdwg.mxu0
    %v758 = vmax.f32 %v756, 0.0
    %v759 = vld [vmem:[%s14] sm:$0x1]
    %v761 = vperm.slane %v759, 0
    %v763 = vmul.f32 %v758, %v761
    %v764 = vsel %vm73, %v763, 0.0
    %765 = vadd.xlane.f32.xlu0 %v764
    %v766 = vpop.xlane.xlu0 %765
    %v767 = vld [vmem:[#allocation3] sm:$0x1]
    %v769 = vperm.slane %v767, 0
    %v771 = vadd.f32 %v766, %v769
    %vm772 = vcmask 7168
    %773 = vst.msk [vmem:[%s16] sm:$0xff] %vm772, %v771
    // Predicated region
    $region66: #{qconvlstm_forward.5} parent=1 // pred_check
      _
    $region67: #{qconvlstm_forward.5} parent=1 // pred_check_branch
      %775 = sbr.rel (0) target = $region69
    $region68: #{qconvlstm_forward.5} parent=1 // pred_region
      _
    $region69: #{qconvlstm_forward.5} parent=1 // pred_fallthru
      _
    // Predicated region
    $region70: #{qconvlstm_forward.5} parent=1 // pred_check
      _
    $region71: #{qconvlstm_forward.5} parent=1 // pred_check_branch
      %777 = sbr.rel (0) target = $region73
    $region72: #{qconvlstm_forward.5} parent=1 // pred_region
      %779 = vsyncadd [#allocation5], 0
      %s781 = sshll.u32 [#allocation4], 4
      %s782 = int_to_ptr.vmem [resolvable:$true] %s781
      %s783 = sshll.u32 %s17, 4
      %s784 = int_to_ptr.hbm [resolvable:$true] %s783
      %786 = dma.vmem_to_hbm [thread:$0]  %s782, 32, %s784, [#allocation5]
    $region73: #{qconvlstm_forward.5} parent=1 // pred_fallthru
      _
    // Predicated region
    $region74: #{qconvlstm_forward.5} parent=1 // pred_check
      _
    $region75: #{qconvlstm_forward.5} parent=1 // pred_check_branch
      %788 = sbr.rel (0) target = $region77
    $region76: #{qconvlstm_forward.5} parent=1 // pred_region
      %790 = vsyncadd [#allocation7], 0
      %s792 = sshll.u32 [#allocation6], 4
      %s793 = int_to_ptr.vmem [resolvable:$true] %s792
      %s794 = sshll.u32 %s18, 4
      %s795 = int_to_ptr.hbm [resolvable:$true] %s794
      %797 = dma.vmem_to_hbm [thread:$0]  %s793, 32, %s795, [#allocation7]
    $region77: #{qconvlstm_forward.5} parent=1 // pred_fallthru
      _
    // Predicated region
    $region78: #{qconvlstm_forward.5} parent=1 // pred_check
      _
    $region79: #{qconvlstm_forward.5} parent=1 // pred_check_branch
      %799 = sbr.rel (0) target = $region81
    $region80: #{qconvlstm_forward.5} parent=1 // pred_region
      _
    $region81: #{qconvlstm_forward.5} parent=1 // pred_fallthru
      _
    // Predicated region
    $region82: #{qconvlstm_forward.5} parent=1 // pred_check
      _
    $region83: #{qconvlstm_forward.5} parent=1 // pred_check_branch
      %801 = sbr.rel (0) target = $region85
    $region84: #{qconvlstm_forward.5} parent=1 // pred_region
      %803 = dma.done [#allocation5], 32
    $region85: #{qconvlstm_forward.5} parent=1 // pred_fallthru
      _
    // Predicated region
    $region86: #{qconvlstm_forward.5} parent=1 // pred_check
      _
    $region87: #{qconvlstm_forward.5} parent=1 // pred_check_branch
      %805 = sbr.rel (0) target = $region89
    $region88: #{qconvlstm_forward.5} parent=1 // pred_region
      %807 = dma.done [#allocation7], 32
    $region89: #{qconvlstm_forward.5} parent=1 // pred_fallthru
      _
    %808 = vsyncpa [#allocation5], 1
    %809 = vsyncpa [#allocation7], 1

</llo_original>
